<compile_context>
chip_gen: v6e
topology: v6e:2x2x1
jax: 0.10.0
libtpu: 0.0.40
codegen_flags: <defaults>
</compile_context>

<pallas_src>
import jax
import jax.numpy as jnp
from jax.experimental import pallas as pl
from jax.experimental.pallas import tpu as pltpu


def gated_attention_kernel(
    x_ref,                    # (TN, D)   patch-feature tile (streams over the grid)
    w1_ref, b1_ref,           # (D, H), (1, H)      feature_projection
    wg_ref, bg_ref,           # (H, 2A), (1, 2A)    fused [tanh | sigmoid] gate projection
    wa_t_ref, ba_t_ref,       # (B, A), (B, 1)      attention_weights (pre-transposed)
    wc_ref, bc_ref,           # (1, H*B), (1, 1)    classifier
    pred_ref,                 # (1, 1)              output: bag prediction
    attn_ref,                 # (T, B, TN)          output: per-tile attention rows (resident)
    m_sc, l_sc, acc_sc,       # (B,1), (B,1), (B,H) online-softmax running state
):
    i = pl.program_id(0)
    num_tiles = pl.num_programs(0)

    @pl.when(i == 0)
    def _init():
        m_sc[...] = jnp.full(m_sc.shape, -jnp.inf, m_sc.dtype)
        l_sc[...] = jnp.zeros(l_sc.shape, l_sc.dtype)
        acc_sc[...] = jnp.zeros(acc_sc.shape, acc_sc.dtype)

    # ---- feature projection + ReLU (MXU, f32 accumulation) ----
    h = jnp.dot(x_ref[...], w1_ref[...], preferred_element_type=jnp.float32) + b1_ref[...]
    h = jnp.maximum(h, 0.0)                               # (TN, H) f32
    hc = h.astype(wg_ref.dtype)                           # compute dtype for subsequent MXU ops

    # ---- fused gated attention: one (H, 2A) matmul; tanh on 1st half, sigmoid on 2nd ----
    g = jnp.dot(hc, wg_ref[...], preferred_element_type=jnp.float32) + bg_ref[...]
    A = g.shape[1] // 2
    gate = jnp.tanh(g[:, :A]) * jax.nn.sigmoid(g[:, A:])  # (TN, A) f32

    # ---- attention scores emitted directly in lane-dense (B, TN) layout (no transpose) ----
    scores = jax.lax.dot_general(
        wa_t_ref[...], gate.astype(wa_t_ref.dtype),
        dimension_numbers=(((1,), (1,)), ((), ())),        # contract A with A -> (B, TN)
        preferred_element_type=jnp.float32,
    ) + ba_t_ref[...]                                      # (B, TN)

    # Stash raw scores for this tile in the resident attention output; the epilogue
    # turns them into the normalized softmax in one shot.
    attn_ref[i] = scores

    # ---- online softmax + aggregation (flash-style, single pass over patches) ----
    m_prev = m_sc[...]
    m_new = jnp.maximum(m_prev, jnp.max(scores, axis=1, keepdims=True))   # (B, 1)
    alpha = jnp.exp(m_prev - m_new)                        # rescale of running state
    e = jnp.exp(scores - m_new)                            # (B, TN) f32
    l_sc[...] = alpha * l_sc[...] + jnp.sum(e, axis=1, keepdims=True)
    acc_sc[...] = alpha * acc_sc[...] + jnp.dot(
        e.astype(hc.dtype), hc, preferred_element_type=jnp.float32)       # (B, H)
    m_sc[...] = m_new

    # ---- epilogue: normalize attention, classify aggregated features ----
    @pl.when(i == num_tiles - 1)
    def _finalize():
        inv_l = pl.reciprocal(l_sc[...], approx=False)     # exact; runs once at the tail
        # Normalize the full resident score slab: softmax over all patches.
        attn_ref[...] = jnp.exp(attn_ref[...] - m_sc[...]) * inv_l
        agg = acc_sc[...] * inv_l                          # (B, H) aggregated features
        # Classifier (H*B -> 1): tiny dot -> do it on the VPU (mul + lane reduce),
        # avoiding a serialized MXU drain for a single scalar.
        logit = jnp.sum(agg.reshape(1, -1) * wc_ref[...], axis=-1, keepdims=True) + bc_ref[...]
        pred_ref[...] = jax.nn.sigmoid(logit)              # (1, 1)


def gated_attention_forward(x, params, *, tile_n=128, compute_dtype=jnp.float32):
    """x: (N, input_dim) float32. params: dict of pre-transposed weights.

    Returns (prediction (1,1) f32, attention (B, N) f32)."""
    N, D = x.shape
    H = params["w1"].shape[1]
    A = params["wt"].shape[1]
    B = params["wa"].shape[1]
    if B != 1:
        # PyTorch module's classifier (Linear(H*B, 1) applied to (B, H)) also requires B == 1.
        raise ValueError("attention_branches must be 1 to match the PyTorch module")

    tn = min(tile_n, N)
    if N % tn != 0:
        raise ValueError(f"N={N} must be a multiple of tile_n={tn}")
    num_tiles = N // tn

    cd = compute_dtype
    f32 = jnp.float32

    # Wrapper-side packing / casts (no in-kernel copies).
    xc = x.astype(cd)
    w1 = params["w1"].astype(cd)                               # (D, H)
    b1 = params["b1"].astype(f32)                              # (1, H)
    wg = jnp.concatenate([params["wt"], params["ws"]], axis=1).astype(cd)   # (H, 2A)
    bg = jnp.concatenate([params["bt"], params["bs"]], axis=1).astype(f32)  # (1, 2A)
    wa_t = params["wa"].T.astype(cd)                           # (B, A)
    ba_t = params["ba"].T.astype(f32)                          # (B, 1)
    wc_flat = params["wc"].reshape(1, H * B).astype(f32)       # (1, H*B)
    bc = params["bc"].astype(f32)                              # (1, 1)

    const2 = lambda i: (0, 0)

    out_shapes = (
        jax.ShapeDtypeStruct((1, 1), f32),                     # prediction
        jax.ShapeDtypeStruct((num_tiles, B, tn), f32),         # per-tile attention rows
    )

    pred, attn_tiles = pl.pallas_call(
        gated_attention_kernel,
        out_shape=out_shapes,
        grid_spec=pltpu.PrefetchScalarGridSpec(
            num_scalar_prefetch=0,
            grid=(num_tiles,),
            in_specs=[
                pl.BlockSpec((tn, D), lambda i: (i, 0)),       # x tile streams
                pl.BlockSpec((D, H), const2),                  # weights stay resident
                pl.BlockSpec((1, H), const2),
                pl.BlockSpec((H, 2 * A), const2),
                pl.BlockSpec((1, 2 * A), const2),
                pl.BlockSpec((B, A), const2),
                pl.BlockSpec((B, 1), const2),
                pl.BlockSpec((1, H * B), const2),
                pl.BlockSpec((1, 1), const2),
            ],
            out_specs=[
                pl.BlockSpec((1, 1), const2),                              # written in epilogue
                pl.BlockSpec((num_tiles, B, tn), lambda i: (0, 0, 0)),     # resident across grid
            ],
            scratch_shapes=[
                pltpu.VMEM((B, 1), f32),    # running max
                pltpu.VMEM((B, 1), f32),    # running softmax denominator
                pltpu.VMEM((B, H), f32),    # running (unnormalized) aggregated features
            ],
        ),
        compiler_params=pltpu.CompilerParams(
            # Single grid axis is a reduction into resident outputs/scratch.
            dimension_semantics=("arbitrary",),
        ),
    )(xc, w1, b1, wg, bg, wa_t, ba_t, wc_flat, bc)

    # (T, B, TN) -> (B, N); patch order is tile-major which matches the original layout.
    attn = attn_tiles.transpose(1, 0, 2).reshape(B, N)
    return pred, attn


def init_params(key, input_dim, hidden_dim, attention_dim, attention_branches):
    ks = jax.random.split(key, 10)
    scale = 0.02
    return {
        "w1": scale * jax.random.normal(ks[0], (input_dim, hidden_dim), jnp.float32),
        "b1": scale * jax.random.normal(ks[1], (1, hidden_dim), jnp.float32),
        "wt": scale * jax.random.normal(ks[2], (hidden_dim, attention_dim), jnp.float32),
        "bt": scale * jax.random.normal(ks[3], (1, attention_dim), jnp.float32),
        "ws": scale * jax.random.normal(ks[4], (hidden_dim, attention_dim), jnp.float32),
        "bs": scale * jax.random.normal(ks[5], (1, attention_dim), jnp.float32),
        "wa": scale * jax.random.normal(ks[6], (attention_dim, attention_branches), jnp.float32),
        "ba": scale * jax.random.normal(ks[7], (1, attention_branches), jnp.float32),
        "wc": scale * jax.random.normal(
            ks[8], (hidden_dim * attention_branches, 1), jnp.float32),
        "bc": scale * jax.random.normal(ks[9], (1, 1), jnp.float32),
    }


def reference_forward(x, p):
    """Pure-JAX f32 reference matching the PyTorch forward."""
    h = jnp.maximum(x @ p["w1"] + p["b1"], 0.0)
    at = jnp.tanh(h @ p["wt"] + p["bt"])
    asig = jax.nn.sigmoid(h @ p["ws"] + p["bs"])
    scores = ((at * asig) @ p["wa"] + p["ba"]).T
    attn = jax.nn.softmax(scores, axis=1)
    agg = attn @ h
    pred = jax.nn.sigmoid(agg.reshape(1, -1) @ p["wc"] + p["bc"])
    return pred, attn


if __name__ == "__main__":
    # Small TPU-friendly shapes (scaled down from the 2048-dim production config).
    # N = 256 with tile_n = 128 exercises the gridded / online-softmax path (2 tiles).
    N, INPUT_DIM, HIDDEN_DIM, ATTN_DIM, BRANCHES = 256, 256, 128, 128, 1

    key = jax.random.PRNGKey(0)
    k_x, k_p = jax.random.split(key)
    x = jax.random.normal(k_x, (N, INPUT_DIM), jnp.float32)
    params = init_params(k_p, INPUT_DIM, HIDDEN_DIM, ATTN_DIM, BRANCHES)

    pred_ref, attn_ref_val = reference_forward(x, params)

    # f32 compute path
    pred, attn = gated_attention_forward(x, params, tile_n=128, compute_dtype=jnp.float32)
    pred = jax.block_until_ready(pred)
    attn = jax.block_until_ready(attn)
    assert pred.shape == (1, 1) and attn.shape == (BRANCHES, N)
    assert jnp.allclose(pred, pred_ref, atol=1e-4, rtol=1e-4)
    assert jnp.allclose(attn, attn_ref_val, atol=1e-4, rtol=1e-4)

    # bf16 compute path (halves HBM traffic; f32 accumulation + f32 softmax/exp)
    pred_bf, attn_bf = gated_attention_forward(x, params, tile_n=128,
                                               compute_dtype=jnp.bfloat16)
    pred_bf = jax.block_until_ready(pred_bf)
    attn_bf = jax.block_until_ready(attn_bf)
    assert jnp.allclose(pred_bf, pred_ref, atol=2e-2, rtol=2e-2)
    assert jnp.allclose(attn_bf, attn_ref_val, atol=2e-2, rtol=2e-2)

    print("KERNEL_OK")
</pallas_src>

<mosaic_0001>
module attributes {stable_mosaic.version = 11 : i64} {
  func.func @gated_attention_kernel(%arg0: i32, %arg1: memref<128x256xf32, #tpu.memory_space<vmem>>, %arg2: memref<256x128xf32, #tpu.memory_space<vmem>>, %arg3: memref<1x128xf32, #tpu.memory_space<vmem>>, %arg4: memref<128x256xf32, #tpu.memory_space<vmem>>, %arg5: memref<1x256xf32, #tpu.memory_space<vmem>>, %arg6: memref<1x128xf32, #tpu.memory_space<vmem>>, %arg7: memref<1x1xf32, #tpu.memory_space<vmem>>, %arg8: memref<1x128xf32, #tpu.memory_space<vmem>>, %arg9: memref<1x1xf32, #tpu.memory_space<vmem>>, %arg10: memref<1x1xf32, #tpu.memory_space<vmem>>, %arg11: memref<2x1x128xf32, #tpu.memory_space<vmem>>, %arg12: memref<1x1xf32, #tpu.memory_space<vmem>>, %arg13: memref<1x1xf32, #tpu.memory_space<vmem>>, %arg14: memref<1x128xf32, #tpu.memory_space<vmem>>) attributes {dimension_semantics = [#tpu.dimension_semantics<arbitrary>], iteration_bounds = array<i64: 2>, scalar_prefetch = 0 : i64, scratch_operands = 3 : i64, tpu.core_type = #tpu.core_type<tc>, window_params = [{transform_indices = @transform_0, window_bounds = array<i64: 128, 256>}, {pipeline_mode = #tpu.pipeline_mode<synchronous>, transform_indices = @transform_1, window_bounds = array<i64: 256, 128>}, {pipeline_mode = #tpu.pipeline_mode<synchronous>, transform_indices = @transform_2, window_bounds = array<i64: 1, 128>}, {pipeline_mode = #tpu.pipeline_mode<synchronous>, transform_indices = @transform_3, window_bounds = array<i64: 128, 256>}, {pipeline_mode = #tpu.pipeline_mode<synchronous>, transform_indices = @transform_4, window_bounds = array<i64: 1, 256>}, {pipeline_mode = #tpu.pipeline_mode<synchronous>, transform_indices = @transform_5, window_bounds = array<i64: 1, 128>}, {pipeline_mode = #tpu.pipeline_mode<synchronous>, transform_indices = @transform_6, window_bounds = array<i64: 1, 1>}, {pipeline_mode = #tpu.pipeline_mode<synchronous>, transform_indices = @transform_7, window_bounds = array<i64: 1, 128>}, {pipeline_mode = #tpu.pipeline_mode<synchronous>, transform_indices = @transform_8, window_bounds = array<i64: 1, 1>}, {pipeline_mode = #tpu.pipeline_mode<synchronous>, transform_indices = @transform_9, window_bounds = array<i64: 1, 1>}, {pipeline_mode = #tpu.pipeline_mode<synchronous>, transform_indices = @transform_10, window_bounds = array<i64: 2, 1, 128>}]} {
    %c0_i32 = arith.constant 0 : i32
    %0 = arith.cmpi eq, %arg0, %c0_i32 : i32
    %1 = arith.extui %0 : i1 to i32
    %c0_i32_0 = arith.constant 0 : i32
    %2 = arith.cmpi ne, %1, %c0_i32_0 : i32
    scf.if %2 {
      %cst_36 = arith.constant 0xFF800000 : f32
      %59 = vector.broadcast %cst_36 : f32 to vector<1x1xf32>
      %c0_37 = arith.constant 0 : index
      %c0_38 = arith.constant 0 : index
      %60 = vector.load %arg12[%c0_37, %c0_38] : memref<1x1xf32, #tpu.memory_space<vmem>>, vector<1x1xf32>
      tpu.vector_store %arg12[%c0_37, %c0_38], %59 {strides = array<i32>} : memref<1x1xf32, #tpu.memory_space<vmem>>, vector<1x1xf32>,
      %cst_39 = arith.constant 0.000000e+00 : f32
      %61 = vector.broadcast %cst_39 : f32 to vector<1x1xf32>
      %c0_40 = arith.constant 0 : index
      %c0_41 = arith.constant 0 : index
      %62 = vector.load %arg13[%c0_40, %c0_41] : memref<1x1xf32, #tpu.memory_space<vmem>>, vector<1x1xf32>
      tpu.vector_store %arg13[%c0_40, %c0_41], %61 {strides = array<i32>} : memref<1x1xf32, #tpu.memory_space<vmem>>, vector<1x1xf32>,
      %cst_42 = arith.constant 0.000000e+00 : f32
      %63 = vector.broadcast %cst_42 : f32 to vector<1x128xf32>
      %c0_43 = arith.constant 0 : index
      %c0_44 = arith.constant 0 : index
      %64 = vector.load %arg14[%c0_43, %c0_44] : memref<1x128xf32, #tpu.memory_space<vmem>>, vector<1x128xf32>
      tpu.vector_store %arg14[%c0_43, %c0_44], %63 {strides = array<i32>} : memref<1x128xf32, #tpu.memory_space<vmem>>, vector<1x128xf32>,
    } else {
    }
    %c0 = arith.constant 0 : index
    %c0_1 = arith.constant 0 : index
    %3 = vector.load %arg1[%c0, %c0_1] : memref<128x256xf32, #tpu.memory_space<vmem>>, vector<128x256xf32>
    %c0_2 = arith.constant 0 : index
    %c0_3 = arith.constant 0 : index
    %4 = vector.load %arg2[%c0_2, %c0_3] : memref<256x128xf32, #tpu.memory_space<vmem>>, vector<256x128xf32>
    %cst = arith.constant dense<0.000000e+00> : vector<128x128xf32>
    %5 = tpu.matmul %3, %4, %cst {dimension_numbers = #tpu.dot_dimension_numbers<[1], [0], [0], [1], [0, 0, 1, 1], [], []>} : vector<128x256xf32>, vector<256x128xf32>, vector<128x128xf32> -> vector<128x128xf32>
    %c0_4 = arith.constant 0 : index
    %c0_5 = arith.constant 0 : index
    %6 = vector.load %arg3[%c0_4, %c0_5] : memref<1x128xf32, #tpu.memory_space<vmem>>, vector<1x128xf32>
    %7 = vector.broadcast %6 : vector<1x128xf32> to vector<128x128xf32>
    %8 = arith.addf %5, %7 : vector<128x128xf32>
    %cst_6 = arith.constant 0.000000e+00 : f32
    %9 = vector.broadcast %cst_6 : f32 to vector<128x128xf32>
    %10 = arith.maximumf %8, %9 : vector<128x128xf32>
    %c0_7 = arith.constant 0 : index
    %c0_8 = arith.constant 0 : index
    %11 = vector.load %arg4[%c0_7, %c0_8] : memref<128x256xf32, #tpu.memory_space<vmem>>, vector<128x256xf32>
    %cst_9 = arith.constant dense<0.000000e+00> : vector<128x256xf32>
    %12 = tpu.matmul %10, %11, %cst_9 {dimension_numbers = #tpu.dot_dimension_numbers<[1], [0], [0], [1], [0, 0, 1, 1], [], []>} : vector<128x128xf32>, vector<128x256xf32>, vector<128x256xf32> -> vector<128x256xf32>
    %c0_10 = arith.constant 0 : index
    %c0_11 = arith.constant 0 : index
    %13 = vector.load %arg5[%c0_10, %c0_11] : memref<1x256xf32, #tpu.memory_space<vmem>>, vector<1x256xf32>
    %14 = vector.broadcast %13 : vector<1x256xf32> to vector<128x256xf32>
    %15 = arith.addf %12, %14 : vector<128x256xf32>
    %16 = vector.extract_strided_slice %15 {offsets = [0, 0], sizes = [128, 128], strides = [1, 1]} : vector<128x256xf32> to vector<128x128xf32>
    %17 = math.tanh %16 : vector<128x128xf32>
    %18 = vector.extract_strided_slice %15 {offsets = [0, 128], sizes = [128, 128], strides = [1, 1]} : vector<128x256xf32> to vector<128x128xf32>
    %19 = arith.negf %18 : vector<128x128xf32>
    %20 = math.exp %19 : vector<128x128xf32>
    %cst_12 = arith.constant 1.000000e+00 : f32
    %21 = vector.broadcast %cst_12 : f32 to vector<128x128xf32>
    %22 = arith.addf %21, %20 : vector<128x128xf32>
    %23 = arith.divf %21, %22 : vector<128x128xf32>
    %24 = arith.mulf %17, %23 : vector<128x128xf32>
    %c0_13 = arith.constant 0 : index
    %c0_14 = arith.constant 0 : index
    %25 = vector.load %arg6[%c0_13, %c0_14] : memref<1x128xf32, #tpu.memory_space<vmem>>, vector<1x128xf32>
    %cst_15 = arith.constant dense<0.000000e+00> : vector<1x128xf32>
    %26 = tpu.matmul %25, %24, %cst_15 {dimension_numbers = #tpu.dot_dimension_numbers<[1], [1], [0], [0], [0, 0, 1, 0], [], []>} : vector<1x128xf32>, vector<128x128xf32>, vector<1x128xf32> -> vector<1x128xf32>
    %c0_16 = arith.constant 0 : index
    %c0_17 = arith.constant 0 : index
    %27 = vector.load %arg7[%c0_16, %c0_17] : memref<1x1xf32, #tpu.memory_space<vmem>>, vector<1x1xf32>
    %28 = vector.broadcast %27 : vector<1x1xf32> to vector<1x128xf32>
    %29 = arith.addf %26, %28 : vector<1x128xf32>
    %30 = arith.index_cast %arg0 : i32 to index
    %c0_18 = arith.constant 0 : index
    %c0_19 = arith.constant 0 : index
    %31 = vector.load %arg11[%30, %c0_18, %c0_19] : memref<2x1x128xf32, #tpu.memory_space<vmem>>, vector<1x1x128xf32>
    %32 = vector.shape_cast %31 : vector<1x1x128xf32> to vector<1x128xf32>
    %33 = vector.shape_cast %29 : vector<1x128xf32> to vector<1x1x128xf32>
    tpu.vector_store %arg11[%30, %c0_18, %c0_19], %33 {strides = array<i32>} : memref<2x1x128xf32, #tpu.memory_space<vmem>>, vector<1x1x128xf32>,
    %c0_20 = arith.constant 0 : index
    %c0_21 = arith.constant 0 : index
    %34 = vector.load %arg12[%c0_20, %c0_21] : memref<1x1xf32, #tpu.memory_space<vmem>>, vector<1x1xf32>
    %cst_22 = arith.constant dense<0xFF800000> : vector<1xf32>
    %35 = vector.multi_reduction <maximumf>, %29, %cst_22 [1] : vector<1x128xf32> to vector<1xf32>
    %36 = vector.shape_cast %35 : vector<1xf32> to vector<1x1xf32>
    %37 = arith.maximumf %34, %36 : vector<1x1xf32>
    %38 = arith.subf %34, %37 : vector<1x1xf32>
    %39 = math.exp %38 : vector<1x1xf32>
    %40 = vector.broadcast %37 : vector<1x1xf32> to vector<1x128xf32>
    %41 = arith.subf %29, %40 : vector<1x128xf32>
    %42 = math.exp %41 : vector<1x128xf32>
    %c0_23 = arith.constant 0 : index
    %c0_24 = arith.constant 0 : index
    %43 = vector.load %arg13[%c0_23, %c0_24] : memref<1x1xf32, #tpu.memory_space<vmem>>, vector<1x1xf32>
    %44 = arith.mulf %39, %43 : vector<1x1xf32>
    %cst_25 = arith.constant dense<0.000000e+00> : vector<1xf32>
    %45 = vector.multi_reduction <add>, %42, %cst_25 [1] : vector<1x128xf32> to vector<1xf32>
    %46 = vector.shape_cast %45 : vector<1xf32> to vector<1x1xf32>
    %47 = arith.addf %44, %46 : vector<1x1xf32>
    %c0_26 = arith.constant 0 : index
    %c0_27 = arith.constant 0 : index
    %48 = vector.load %arg13[%c0_26, %c0_27] : memref<1x1xf32, #tpu.memory_space<vmem>>, vector<1x1xf32>
    tpu.vector_store %arg13[%c0_26, %c0_27], %47 {strides = array<i32>} : memref<1x1xf32, #tpu.memory_space<vmem>>, vector<1x1xf32>,
    %c0_28 = arith.constant 0 : index
    %c0_29 = arith.constant 0 : index
    %49 = vector.load %arg14[%c0_28, %c0_29] : memref<1x128xf32, #tpu.memory_space<vmem>>, vector<1x128xf32>
    %50 = vector.broadcast %39 : vector<1x1xf32> to vector<1x128xf32>
    %51 = arith.mulf %50, %49 : vector<1x128xf32>
    %cst_30 = arith.constant dense<0.000000e+00> : vector<1x128xf32>
    %52 = tpu.matmul %42, %10, %cst_30 {dimension_numbers = #tpu.dot_dimension_numbers<[1], [0], [0], [1], [0, 0, 1, 1], [], []>} : vector<1x128xf32>, vector<128x128xf32>, vector<1x128xf32> -> vector<1x128xf32>
    %53 = arith.addf %51, %52 : vector<1x128xf32>
    %c0_31 = arith.constant 0 : index
    %c0_32 = arith.constant 0 : index
    %54 = vector.load %arg14[%c0_31, %c0_32] : memref<1x128xf32, #tpu.memory_space<vmem>>, vector<1x128xf32>
    tpu.vector_store %arg14[%c0_31, %c0_32], %53 {strides = array<i32>} : memref<1x128xf32, #tpu.memory_space<vmem>>, vector<1x128xf32>,
    %c0_33 = arith.constant 0 : index
    %c0_34 = arith.constant 0 : index
    %55 = vector.load %arg12[%c0_33, %c0_34] : memref<1x1xf32, #tpu.memory_space<vmem>>, vector<1x1xf32>
    tpu.vector_store %arg12[%c0_33, %c0_34], %37 {strides = array<i32>} : memref<1x1xf32, #tpu.memory_space<vmem>>, vector<1x1xf32>,
    %c1_i32 = arith.constant 1 : i32
    %56 = arith.cmpi eq, %arg0, %c1_i32 : i32
    %57 = arith.extui %56 : i1 to i32
    %c0_i32_35 = arith.constant 0 : i32
    %58 = arith.cmpi ne, %57, %c0_i32_35 : i32
    scf.if %58 {
      %c0_36 = arith.constant 0 : index
      %c0_37 = arith.constant 0 : index
      %59 = vector.load %arg13[%c0_36, %c0_37] : memref<1x1xf32, #tpu.memory_space<vmem>>, vector<1x1xf32>
      %60 = tpu.reciprocal %59 : vector<1x1xf32> -> vector<1x1xf32>
      %c0_38 = arith.constant 0 : index
      %c0_39 = arith.constant 0 : index
      %c0_40 = arith.constant 0 : index
      %61 = vector.load %arg11[%c0_38, %c0_39, %c0_40] : memref<2x1x128xf32, #tpu.memory_space<vmem>>, vector<2x1x128xf32>
      %c0_41 = arith.constant 0 : index
      %c0_42 = arith.constant 0 : index
      %62 = vector.load %arg12[%c0_41, %c0_42] : memref<1x1xf32, #tpu.memory_space<vmem>>, vector<1x1xf32>
      %63 = vector.shape_cast %62 : vector<1x1xf32> to vector<1x1x1xf32>
      %64 = vector.broadcast %63 : vector<1x1x1xf32> to vector<2x1x128xf32>
      %65 = arith.subf %61, %64 : vector<2x1x128xf32>
      %66 = math.exp %65 : vector<2x1x128xf32>
      %67 = vector.shape_cast %60 : vector<1x1xf32> to vector<1x1x1xf32>
      %68 = vector.broadcast %67 : vector<1x1x1xf32> to vector<2x1x128xf32>
      %69 = arith.mulf %66, %68 : vector<2x1x128xf32>
      %c0_43 = arith.constant 0 : index
      %c0_44 = arith.constant 0 : index
      %c0_45 = arith.constant 0 : index
      %70 = vector.load %arg11[%c0_43, %c0_44, %c0_45] : memref<2x1x128xf32, #tpu.memory_space<vmem>>, vector<2x1x128xf32>
      tpu.vector_store %arg11[%c0_43, %c0_44, %c0_45], %69 {strides = array<i32>} : memref<2x1x128xf32, #tpu.memory_space<vmem>>, vector<2x1x128xf32>,
      %c0_46 = arith.constant 0 : index
      %c0_47 = arith.constant 0 : index
      %71 = vector.load %arg14[%c0_46, %c0_47] : memref<1x128xf32, #tpu.memory_space<vmem>>, vector<1x128xf32>
      %72 = vector.broadcast %60 : vector<1x1xf32> to vector<1x128xf32>
      %73 = arith.mulf %71, %72 : vector<1x128xf32>
      %c0_48 = arith.constant 0 : index
      %c0_49 = arith.constant 0 : index
      %74 = vector.load %arg8[%c0_48, %c0_49] : memref<1x128xf32, #tpu.memory_space<vmem>>, vector<1x128xf32>
      %75 = arith.mulf %73, %74 : vector<1x128xf32>
      %cst_50 = arith.constant dense<0.000000e+00> : vector<1xf32>
      %76 = vector.multi_reduction <add>, %75, %cst_50 [1] : vector<1x128xf32> to vector<1xf32>
      %77 = vector.shape_cast %76 : vector<1xf32> to vector<1x1xf32>
      %c0_51 = arith.constant 0 : index
      %c0_52 = arith.constant 0 : index
      %78 = vector.load %arg9[%c0_51, %c0_52] : memref<1x1xf32, #tpu.memory_space<vmem>>, vector<1x1xf32>
      %79 = arith.addf %77, %78 : vector<1x1xf32>
      %80 = arith.negf %79 : vector<1x1xf32>
      %81 = math.exp %80 : vector<1x1xf32>
      %cst_53 = arith.constant 1.000000e+00 : f32
      %82 = vector.broadcast %cst_53 : f32 to vector<1x1xf32>
      %83 = arith.addf %82, %81 : vector<1x1xf32>
      %84 = arith.divf %82, %83 : vector<1x1xf32>
      %c0_54 = arith.constant 0 : index
      %c0_55 = arith.constant 0 : index
      %85 = vector.load %arg10[%c0_54, %c0_55] : memref<1x1xf32, #tpu.memory_space<vmem>>, vector<1x1xf32>
      tpu.vector_store %arg10[%c0_54, %c0_55], %84 {strides = array<i32>} : memref<1x1xf32, #tpu.memory_space<vmem>>, vector<1x1xf32>,
    } else {
    }
    return
  }
  func.func @transform_0(%arg0: i32) -> (i32, i32) {
    %c0_i32 = arith.constant 0 : i32
    %c0_i32_0 = arith.constant 0 : i32
    return %arg0, %c0_i32 : i32, i32
  }
  func.func @transform_1(%arg0: i32) -> (i32, i32) {
    %c0_i32 = arith.constant 0 : i32
    %c0_i32_0 = arith.constant 0 : i32
    %c0_i32_1 = arith.constant 0 : i32
    return %c0_i32, %c0_i32_0 : i32, i32
  }
  func.func @transform_2(%arg0: i32) -> (i32, i32) {
    %c0_i32 = arith.constant 0 : i32
    %c0_i32_0 = arith.constant 0 : i32
    %c0_i32_1 = arith.constant 0 : i32
    return %c0_i32, %c0_i32_0 : i32, i32
  }
  func.func @transform_3(%arg0: i32) -> (i32, i32) {
    %c0_i32 = arith.constant 0 : i32
    %c0_i32_0 = arith.constant 0 : i32
    %c0_i32_1 = arith.constant 0 : i32
    return %c0_i32, %c0_i32_0 : i32, i32
  }
  func.func @transform_4(%arg0: i32) -> (i32, i32) {
    %c0_i32 = arith.constant 0 : i32
    %c0_i32_0 = arith.constant 0 : i32
    %c0_i32_1 = arith.constant 0 : i32
    return %c0_i32, %c0_i32_0 : i32, i32
  }
  func.func @transform_5(%arg0: i32) -> (i32, i32) {
    %c0_i32 = arith.constant 0 : i32
    %c0_i32_0 = arith.constant 0 : i32
    %c0_i32_1 = arith.constant 0 : i32
    return %c0_i32, %c0_i32_0 : i32, i32
  }
  func.func @transform_6(%arg0: i32) -> (i32, i32) {
    %c0_i32 = arith.constant 0 : i32
    %c0_i32_0 = arith.constant 0 : i32
    %c0_i32_1 = arith.constant 0 : i32
    return %c0_i32, %c0_i32_0 : i32, i32
  }
  func.func @transform_7(%arg0: i32) -> (i32, i32) {
    %c0_i32 = arith.constant 0 : i32
    %c0_i32_0 = arith.constant 0 : i32
    %c0_i32_1 = arith.constant 0 : i32
    return %c0_i32, %c0_i32_0 : i32, i32
  }
  func.func @transform_8(%arg0: i32) -> (i32, i32) {
    %c0_i32 = arith.constant 0 : i32
    %c0_i32_0 = arith.constant 0 : i32
    %c0_i32_1 = arith.constant 0 : i32
    return %c0_i32, %c0_i32_0 : i32, i32
  }
  func.func @transform_9(%arg0: i32) -> (i32, i32) {
    %c0_i32 = arith.constant 0 : i32
    %c0_i32_0 = arith.constant 0 : i32
    %c0_i32_1 = arith.constant 0 : i32
    return %c0_i32, %c0_i32_0 : i32, i32
  }
  func.func @transform_10(%arg0: i32) -> (i32, i32, i32) {
    %c0_i32 = arith.constant 0 : i32
    %c0_i32_0 = arith.constant 0 : i32
    %c0_i32_1 = arith.constant 0 : i32
    %c0_i32_2 = arith.constant 0 : i32
    return %c0_i32, %c0_i32_0, %c0_i32_1 : i32, i32, i32
  }
}

</mosaic_0001>

<llo_original>
// kernel: tpu_custom_call.1
$region0: #{tpu_custom_call.1}
  #allocation0 [shape = 'u32[]', space=smem, size = 0x4, offset = 0x4, fixed_abs, tag = 'smem constant byte address 0x4 - core index']
  #allocation1 [shape = 'u32[144,128]{1,0:T(1,128)}', space=vmem, size = 0x12000, scoped, tag = 'internal scratch']
  #allocation2 [shape = 'f32[1,1]{1,0:T(1,128)}', space=vmem, size = 0x200, scoped, tag = 'scratch operand']
  #allocation3 [shape = 'f32[1,1]{1,0:T(1,128)}', space=vmem, size = 0x200, scoped, tag = 'scratch operand']
  #allocation4 [shape = 'f32[1,128]{1,0:T(1,128)}', space=vmem, size = 0x200, scoped, tag = 'scratch operand']
  #allocation5 [shape = 'f32[1,1]{1,0:T(1,128)S(1)}', space=vmem, size = 0x200, scoped, tag = 'scoped memory for tpu_custom_call.1']
  #allocation6 [shape = 'f32[1,1]{1,0:T(1,128)S(1)}', space=vmem, size = 0x200, scoped, tag = 'scoped memory for tpu_custom_call.1']
  %s0 = inlined_call_operand.hbm [shape: f32[256,256], index: 0, kind: input, shape index: {}]
  %s1 = inlined_call_operand.hbm [shape: f32[256,128], index: 1, kind: input, shape index: {}]
  %s2 = inlined_call_operand.vmem [shape: f32[1,128], index: 2, kind: input, shape index: {}]
  %s3 = inlined_call_operand.hbm [shape: f32[128,256], index: 3, kind: input, shape index: {}]
  %s4 = inlined_call_operand.vmem [shape: f32[1,256], index: 4, kind: input, shape index: {}]
  %s5 = inlined_call_operand.vmem [shape: f32[1,128], index: 5, kind: input, shape index: {}]
  %s6 = inlined_call_operand.<no memory space> [shape: f32[1,1], index: 6, kind: input, shape index: {}]
  %s7 = inlined_call_operand.vmem [shape: f32[1,128], index: 7, kind: input, shape index: {}]
  %s8 = inlined_call_operand.<no memory space> [shape: f32[1,1], index: 8, kind: input, shape index: {}]
  %s9 = inlined_call_operand.hbm [shape: f32[1,1], index: 9, kind: output, shape index: {0}]
  %s10 = inlined_call_operand.hbm [shape: f32[2,1,128], index: 10, kind: output, shape index: {1}]
  %11 = xla_tuple %s9, %s10
  %s12 = sld [smem:[#allocation0]]
  $region97: #{tpu_custom_call.1} parent=0
    _
  %s14 = ssub.s32 1, %s12
  %s15 = scalar_select 0, %s14, %s12
  %v16 = vstv %s6
  %17 = vst [vmem:[#allocation5] sm:$0x1] %v16
  %v18 = vstv %s8
  %19 = vst [vmem:[#allocation6] sm:$0x1] %v18
  $region1: #{tpu_custom_call.1} parent=0
    #allocation7 [shape = 'u8[262144]{0}', space=vmem, size = 0x40000, scoped, tag = 'input window, operand 0']
    #allocation8 [shape = 's32[2]{0}', space=sflag, size = 0x8, scoped, tag = 'scoped memory for tpu_custom_call.1']
    #allocation9 [shape = 's32[2]{0}', space=sflag, size = 0x8, scoped, tag = 'scoped memory for tpu_custom_call.1']
    #allocation10 [shape = 'u8[131072]{0}', space=vmem, size = 0x20000, scoped, tag = 'input window, operand 1, single buffered']
    #allocation11 [shape = 's32[1]{0}', space=sflag, size = 0x4, scoped, tag = 'scoped memory for tpu_custom_call.1']
    #allocation12 [shape = 'u8[131072]{0}', space=vmem, size = 0x20000, scoped, tag = 'input window, operand 3, single buffered']
    #allocation13 [shape = 'u8[512]{0}', space=vmem, size = 0x400, scoped, tag = 'output window, operand 0, single buffered']
    #allocation14 [shape = 'u8[1024]{0}', space=vmem, size = 0x400, scoped, tag = 'output window, operand 1, single buffered']
    #allocation15 [shape = 's32[1]{0}', space=sflag, size = 0x4, scoped, tag = 'scoped memory for tpu_custom_call.1']
    %20 = vsyncpa [#allocation8], 0
    %s21 = scalar_lea.sflag [#allocation8], 1
    %22 = vsyncpa %s21, 0
    %23 = vsyncpa [#allocation11], 0
    %24 = vsyncpa [#allocation9], 0
    %25 = vsyncpa [#allocation15], 0
    loop: start=0, step=1, limit=4
    $region2: #{tpu_custom_call.1} parent=1 // loop_pre_header
      _
    $region3: #{tpu_custom_call.1} parent=1 // loop_header
      %s27 = sphi 0, %s31
      %p28 = scmp.ge.s32.totalorder %s27, 4
      %s37 = sphi 0, %s39
      %s40 = sphi 0, %s37
      %s41 = sphi 0, %s40
      %s57 = sphi 0, %s41
      %s61 = sphi 0, %s61
      %s63 = sphi 0, %s61
      %s64 = sphi 0, %s63
      %s78 = sphi 0, %s64
      %s82 = sphi 0, %s82
      %s84 = sphi 0, %s82
      %s85 = sphi 0, %s84
      %s99 = sphi 0, %s85
      %s103 = sphi 0, %s103
      %s105 = sphi 0, %s103
      %s106 = sphi 0, %s105
      %s120 = sphi 0, %s106
      %s124 = sphi 0, %s124
      %s126 = sphi 0, %s124
      %s127 = sphi 0, %s126
      %s141 = sphi 0, %s127
      %s145 = sphi 0, %s145
      %s147 = sphi 0, %s145
      %s148 = sphi 0, %s147
      %s162 = sphi 0, %s148
      %s166 = sphi 0, %s166
      %s168 = sphi 0, %s166
      %s169 = sphi 0, %s168
      %s183 = sphi 0, %s169
      %s187 = sphi 0, %s187
      %s189 = sphi 0, %s187
      %s190 = sphi 0, %s189
      %s204 = sphi 0, %s190
      %s208 = sphi 0, %s208
      %s210 = sphi 0, %s208
      %s211 = sphi 0, %s210
      %s225 = sphi 0, %s211
      %s229 = sphi 0, %s229
      %s231 = sphi 0, %s229
      %s232 = sphi 0, %s231
      %s246 = sphi 0, %s232
      %s250 = sphi 0, %s250
      %s252 = sphi 0, %s250
      %s253 = sphi 0, %s252
      %s267 = sphi 0, %s253
    $region4: #{tpu_custom_call.1} parent=1 // loop_header_branch
      %30 = sbr.rel (%p28) target = $region8
    $region5: #{tpu_custom_call.1} parent=1 // loop_body
      %s32 = ssub.s32 %s27, 1
      %s33 = ssub.s32 %s27, 2
      %s34 = sadd.s32 %s27, 1
      %s35 = ssub.s32 %s27, %s34
      %p36 = scmp.eq.s32.totalorder %s35, 0
      %s38 = sadd.s32 %s37, 1
      %s39 = scalar_select %p36, %s37, %s38
      %p42 = pneg %p36
      %p43 = scmp.eq.s32.totalorder %s27, 1
      %p44 = por %p42, %p43
      %p45 = scmp.ne.s32.totalorder %s37, %s40
      %p46 = scmp.eq.s32.totalorder %s27, 0
      %p47 = por %p45, %p46
      %p48 = scmp.ne.s32.totalorder %s37, %s40
      %p49 = scmp.eq.s32.totalorder %s32, 1
      %p50 = por %p48, %p49
      %p51 = scmp.ne.s32.totalorder %s40, %s41
      %p52 = scmp.eq.s32.totalorder %s32, 0
      %p53 = por %p51, %p52
      %p54 = scmp.ne.s32.totalorder %s40, %s41
      %p55 = scmp.eq.s32.totalorder %s33, 1
      %p56 = por %p54, %p55
      %p58 = scmp.ne.s32.totalorder %s41, %s57
      %p59 = scmp.eq.s32.totalorder %s33, 0
      %p60 = por %p58, %p59
      %s62 = sadd.s32 %s61, 1
      %p65 = scmp.eq.s32.totalorder %s27, 1
      %p66 = scmp.ne.s32.totalorder %s61, %s63
      %p67 = scmp.eq.s32.totalorder %s27, 0
      %p68 = por %p66, %p67
      %p69 = scmp.ne.s32.totalorder %s61, %s63
      %p70 = scmp.eq.s32.totalorder %s32, 1
      %p71 = por %p69, %p70
      %p72 = scmp.ne.s32.totalorder %s63, %s64
      %p73 = scmp.eq.s32.totalorder %s32, 0
      %p74 = por %p72, %p73
      %p75 = scmp.ne.s32.totalorder %s63, %s64
      %p76 = scmp.eq.s32.totalorder %s33, 1
      %p77 = por %p75, %p76
      %p79 = scmp.ne.s32.totalorder %s64, %s78
      %p80 = scmp.eq.s32.totalorder %s33, 0
      %p81 = por %p79, %p80
      %s83 = sadd.s32 %s82, 1
      %p86 = scmp.eq.s32.totalorder %s27, 1
      %p87 = scmp.ne.s32.totalorder %s82, %s84
      %p88 = scmp.eq.s32.totalorder %s27, 0
      %p89 = por %p87, %p88
      %p90 = scmp.ne.s32.totalorder %s82, %s84
      %p91 = scmp.eq.s32.totalorder %s32, 1
      %p92 = por %p90, %p91
      %p93 = scmp.ne.s32.totalorder %s84, %s85
      %p94 = scmp.eq.s32.totalorder %s32, 0
      %p95 = por %p93, %p94
      %p96 = scmp.ne.s32.totalorder %s84, %s85
      %p97 = scmp.eq.s32.totalorder %s33, 1
      %p98 = por %p96, %p97
      %p100 = scmp.ne.s32.totalorder %s85, %s99
      %p101 = scmp.eq.s32.totalorder %s33, 0
      %p102 = por %p100, %p101
      %s104 = sadd.s32 %s103, 1
      %p107 = scmp.eq.s32.totalorder %s27, 1
      %p108 = scmp.ne.s32.totalorder %s103, %s105
      %p109 = scmp.eq.s32.totalorder %s27, 0
      %p110 = por %p108, %p109
      %p111 = scmp.ne.s32.totalorder %s103, %s105
      %p112 = scmp.eq.s32.totalorder %s32, 1
      %p113 = por %p111, %p112
      %p114 = scmp.ne.s32.totalorder %s105, %s106
      %p115 = scmp.eq.s32.totalorder %s32, 0
      %p116 = por %p114, %p115
      %p117 = scmp.ne.s32.totalorder %s105, %s106
      %p118 = scmp.eq.s32.totalorder %s33, 1
      %p119 = por %p117, %p118
      %p121 = scmp.ne.s32.totalorder %s106, %s120
      %p122 = scmp.eq.s32.totalorder %s33, 0
      %p123 = por %p121, %p122
      %s125 = sadd.s32 %s124, 1
      %p128 = scmp.eq.s32.totalorder %s27, 1
      %p129 = scmp.ne.s32.totalorder %s124, %s126
      %p130 = scmp.eq.s32.totalorder %s27, 0
      %p131 = por %p129, %p130
      %p132 = scmp.ne.s32.totalorder %s124, %s126
      %p133 = scmp.eq.s32.totalorder %s32, 1
      %p134 = por %p132, %p133
      %p135 = scmp.ne.s32.totalorder %s126, %s127
      %p136 = scmp.eq.s32.totalorder %s32, 0
      %p137 = por %p135, %p136
      %p138 = scmp.ne.s32.totalorder %s126, %s127
      %p139 = scmp.eq.s32.totalorder %s33, 1
      %p140 = por %p138, %p139
      %p142 = scmp.ne.s32.totalorder %s127, %s141
      %p143 = scmp.eq.s32.totalorder %s33, 0
      %p144 = por %p142, %p143
      %s146 = sadd.s32 %s145, 1
      %p149 = scmp.eq.s32.totalorder %s27, 1
      %p150 = scmp.ne.s32.totalorder %s145, %s147
      %p151 = scmp.eq.s32.totalorder %s27, 0
      %p152 = por %p150, %p151
      %p153 = scmp.ne.s32.totalorder %s145, %s147
      %p154 = scmp.eq.s32.totalorder %s32, 1
      %p155 = por %p153, %p154
      %p156 = scmp.ne.s32.totalorder %s147, %s148
      %p157 = scmp.eq.s32.totalorder %s32, 0
      %p158 = por %p156, %p157
      %p159 = scmp.ne.s32.totalorder %s147, %s148
      %p160 = scmp.eq.s32.totalorder %s33, 1
      %p161 = por %p159, %p160
      %p163 = scmp.ne.s32.totalorder %s148, %s162
      %p164 = scmp.eq.s32.totalorder %s33, 0
      %p165 = por %p163, %p164
      %s167 = sadd.s32 %s166, 1
      %p170 = scmp.eq.s32.totalorder %s27, 1
      %p171 = scmp.ne.s32.totalorder %s166, %s168
      %p172 = scmp.eq.s32.totalorder %s27, 0
      %p173 = por %p171, %p172
      %p174 = scmp.ne.s32.totalorder %s166, %s168
      %p175 = scmp.eq.s32.totalorder %s32, 1
      %p176 = por %p174, %p175
      %p177 = scmp.ne.s32.totalorder %s168, %s169
      %p178 = scmp.eq.s32.totalorder %s32, 0
      %p179 = por %p177, %p178
      %p180 = scmp.ne.s32.totalorder %s168, %s169
      %p181 = scmp.eq.s32.totalorder %s33, 1
      %p182 = por %p180, %p181
      %p184 = scmp.ne.s32.totalorder %s169, %s183
      %p185 = scmp.eq.s32.totalorder %s33, 0
      %p186 = por %p184, %p185
      %s188 = sadd.s32 %s187, 1
      %p191 = scmp.eq.s32.totalorder %s27, 1
      %p192 = scmp.ne.s32.totalorder %s187, %s189
      %p193 = scmp.eq.s32.totalorder %s27, 0
      %p194 = por %p192, %p193
      %p195 = scmp.ne.s32.totalorder %s187, %s189
      %p196 = scmp.eq.s32.totalorder %s32, 1
      %p197 = por %p195, %p196
      %p198 = scmp.ne.s32.totalorder %s189, %s190
      %p199 = scmp.eq.s32.totalorder %s32, 0
      %p200 = por %p198, %p199
      %p201 = scmp.ne.s32.totalorder %s189, %s190
      %p202 = scmp.eq.s32.totalorder %s33, 1
      %p203 = por %p201, %p202
      %p205 = scmp.ne.s32.totalorder %s190, %s204
      %p206 = scmp.eq.s32.totalorder %s33, 0
      %p207 = por %p205, %p206
      %s209 = sadd.s32 %s208, 1
      %p212 = scmp.eq.s32.totalorder %s27, 1
      %p213 = scmp.ne.s32.totalorder %s208, %s210
      %p214 = scmp.eq.s32.totalorder %s27, 0
      %p215 = por %p213, %p214
      %p216 = scmp.ne.s32.totalorder %s208, %s210
      %p217 = scmp.eq.s32.totalorder %s32, 1
      %p218 = por %p216, %p217
      %p219 = scmp.ne.s32.totalorder %s210, %s211
      %p220 = scmp.eq.s32.totalorder %s32, 0
      %p221 = por %p219, %p220
      %p222 = scmp.ne.s32.totalorder %s210, %s211
      %p223 = scmp.eq.s32.totalorder %s33, 1
      %p224 = por %p222, %p223
      %p226 = scmp.ne.s32.totalorder %s211, %s225
      %p227 = scmp.eq.s32.totalorder %s33, 0
      %p228 = por %p226, %p227
      %s230 = sadd.s32 %s229, 1
      %p233 = scmp.eq.s32.totalorder %s27, 1
      %p234 = scmp.ne.s32.totalorder %s229, %s231
      %p235 = scmp.eq.s32.totalorder %s27, 0
      %p236 = por %p234, %p235
      %p237 = scmp.ne.s32.totalorder %s229, %s231
      %p238 = scmp.eq.s32.totalorder %s32, 1
      %p239 = por %p237, %p238
      %p240 = scmp.ne.s32.totalorder %s231, %s232
      %p241 = scmp.eq.s32.totalorder %s32, 0
      %p242 = por %p240, %p241
      %p243 = scmp.ne.s32.totalorder %s231, %s232
      %p244 = scmp.eq.s32.totalorder %s33, 1
      %p245 = por %p243, %p244
      %p247 = scmp.ne.s32.totalorder %s232, %s246
      %p248 = scmp.eq.s32.totalorder %s33, 0
      %p249 = por %p247, %p248
      %s251 = sadd.s32 %s250, 1
      %p254 = scmp.eq.s32.totalorder %s27, 1
      %p255 = scmp.ne.s32.totalorder %s250, %s252
      %p256 = scmp.eq.s32.totalorder %s27, 0
      %p257 = por %p255, %p256
      %p258 = scmp.ne.s32.totalorder %s250, %s252
      %p259 = scmp.eq.s32.totalorder %s32, 1
      %p260 = por %p258, %p259
      %p261 = scmp.ne.s32.totalorder %s252, %s253
      %p262 = scmp.eq.s32.totalorder %s32, 0
      %p263 = por %p261, %p262
      %p264 = scmp.ne.s32.totalorder %s252, %s253
      %p265 = scmp.eq.s32.totalorder %s33, 1
      %p266 = por %p264, %p265
      %p268 = scmp.ne.s32.totalorder %s253, %s267
      %p269 = scmp.eq.s32.totalorder %s33, 0
      %p270 = por %p268, %p269
      %p271 = scmp.le.s32.totalorder 1, %s27
      %p272 = scmp.lt.s32.totalorder %s27, 3
      %p273 = pnand %p271, %p272
      %p274 = pneg %p273
      // Predicated region
      $region9: #{tpu_custom_call.1} parent=5 // pred_check
        _
      $region10: #{tpu_custom_call.1} parent=5 // pred_check_branch
        %276 = sbr.rel (%p273) target = $region12
      $region11: #{tpu_custom_call.1} parent=5 // pred_region
        %s277 = ssub.s32 %s27, 1
        // Predicated region
        $region13: #{tpu_custom_call.1} parent=11 // pred_check
          %p278 = pneg %p74
        $region14: #{tpu_custom_call.1} parent=11 // pred_check_branch
          %280 = sbr.rel (%p278) target = $region16
        $region15: #{tpu_custom_call.1} parent=11 // pred_region
          %s282 = ssub.s32 4096, 4096
          %283 = vsyncadd [#allocation11], %s282
          %s284 = sshll.u32 [#allocation10], 4
          %s285 = int_to_ptr.vmem [resolvable:$true] %s284
          %290 = dma.hbm_to_vmem [thread:$0]  %s1, 4096, %s285, [#allocation11], 128, 128, 8
        $region16: #{tpu_custom_call.1} parent=11 // pred_fallthru
          _
        // Predicated region
        $region17: #{tpu_custom_call.1} parent=11 // pred_check
          %p291 = pneg %p95
        $region18: #{tpu_custom_call.1} parent=11 // pred_check_branch
          %293 = sbr.rel (%p291) target = $region20
        $region19: #{tpu_custom_call.1} parent=11 // pred_region
          _
        $region20: #{tpu_custom_call.1} parent=11 // pred_fallthru
          _
        // Predicated region
        $region21: #{tpu_custom_call.1} parent=11 // pred_check
          %p294 = pneg %p116
        $region22: #{tpu_custom_call.1} parent=11 // pred_check_branch
          %296 = sbr.rel (%p294) target = $region24
        $region23: #{tpu_custom_call.1} parent=11 // pred_region
          %s298 = ssub.s32 4096, 4096
          %299 = vsyncadd [#allocation11], %s298
          %s300 = sshll.u32 [#allocation12], 4
          %s301 = int_to_ptr.vmem [resolvable:$true] %s300
          %306 = dma.hbm_to_vmem [thread:$0]  %s3, 4096, %s301, [#allocation11], 256, 256, 16
        $region24: #{tpu_custom_call.1} parent=11 // pred_fallthru
          _
        // Predicated region
        $region25: #{tpu_custom_call.1} parent=11 // pred_check
          %p307 = pneg %p137
        $region26: #{tpu_custom_call.1} parent=11 // pred_check_branch
          %309 = sbr.rel (%p307) target = $region28
        $region27: #{tpu_custom_call.1} parent=11 // pred_region
          _
        $region28: #{tpu_custom_call.1} parent=11 // pred_fallthru
          _
        // Predicated region
        $region29: #{tpu_custom_call.1} parent=11 // pred_check
          %p310 = pneg %p158
        $region30: #{tpu_custom_call.1} parent=11 // pred_check_branch
          %312 = sbr.rel (%p310) target = $region32
        $region31: #{tpu_custom_call.1} parent=11 // pred_region
          _
        $region32: #{tpu_custom_call.1} parent=11 // pred_fallthru
          _
        // Predicated region
        $region33: #{tpu_custom_call.1} parent=11 // pred_check
          %p313 = pneg %p179
        $region34: #{tpu_custom_call.1} parent=11 // pred_check_branch
          %315 = sbr.rel (%p313) target = $region36
        $region35: #{tpu_custom_call.1} parent=11 // pred_region
          _
        $region36: #{tpu_custom_call.1} parent=11 // pred_fallthru
          _
        // Predicated region
        $region37: #{tpu_custom_call.1} parent=11 // pred_check
          %p316 = pneg %p200
        $region38: #{tpu_custom_call.1} parent=11 // pred_check_branch
          %318 = sbr.rel (%p316) target = $region40
        $region39: #{tpu_custom_call.1} parent=11 // pred_region
          _
        $region40: #{tpu_custom_call.1} parent=11 // pred_fallthru
          _
        // Predicated region
        $region41: #{tpu_custom_call.1} parent=11 // pred_check
          %p319 = pneg %p221
        $region42: #{tpu_custom_call.1} parent=11 // pred_check_branch
          %321 = sbr.rel (%p319) target = $region44
        $region43: #{tpu_custom_call.1} parent=11 // pred_region
          _
        $region44: #{tpu_custom_call.1} parent=11 // pred_fallthru
          _
      $region12: #{tpu_custom_call.1} parent=5 // pred_fallthru
        _
      %p322 = scmp.lt.s32.totalorder %s27, 2
      // Predicated region
      $region45: #{tpu_custom_call.1} parent=5 // pred_check
        %p323 = pneg %p322
      $region46: #{tpu_custom_call.1} parent=5 // pred_check_branch
        %325 = sbr.rel (%p323) target = $region48
      $region47: #{tpu_custom_call.1} parent=5 // pred_region
        // Predicated region
        $region49: #{tpu_custom_call.1} parent=47 // pred_check
          %p326 = pneg %p47
        $region50: #{tpu_custom_call.1} parent=47 // pred_check_branch
          %328 = sbr.rel (%p326) target = $region52
        $region51: #{tpu_custom_call.1} parent=47 // pred_region
          %s329 = sand.u32 %s37, 1
          %s330 = scalar_lea.sflag [#allocation8], %s329
          %s331 = sand.u32 %s37, 1
          %s332 = smul.addr %s331, 256
          %s333 = scalar_lea.vmem [#allocation7], %s332
          %s334 = smul.u32 16, %s27
          %s336 = ssub.s32 4096, 4096
          %337 = vsyncadd %s330, %s336
          %s338 = smul.addr %s334, 2
          %s339 = smul.addr %s338, 128
          %s340 = scalar_lea.hbm %s0, %s339
          %s341 = sshll.u32 %s333, 4
          %s342 = int_to_ptr.vmem [resolvable:$true] %s341
          %347 = dma.hbm_to_vmem [thread:$0]  %s340, 4096, %s342, %s330, 256, 256, 16
        $region52: #{tpu_custom_call.1} parent=47 // pred_fallthru
          _
      $region48: #{tpu_custom_call.1} parent=5 // pred_fallthru
        _
      %p348 = scmp.le.s32.totalorder 1, %s27
      %p349 = scmp.lt.s32.totalorder %s27, 3
      %p350 = pnand %p348, %p349
      %p351 = pneg %p350
      // Predicated region
      $region53: #{tpu_custom_call.1} parent=5 // pred_check
        _
      $region54: #{tpu_custom_call.1} parent=5 // pred_check_branch
        %353 = sbr.rel (%p350) target = $region56
      $region55: #{tpu_custom_call.1} parent=5 // pred_region
        %s354 = ssub.s32 %s27, 1
        %s355 = sand.u32 %s40, 1
        %s356 = scalar_lea.sflag [#allocation8], %s355
        %s357 = sand.u32 %s40, 1
        %s358 = smul.addr %s357, 256
        %s359 = scalar_lea.vmem [#allocation7], %s358
        // Predicated region
        $region57: #{tpu_custom_call.1} parent=55 // pred_check
          %p360 = pneg %p53
        $region58: #{tpu_custom_call.1} parent=55 // pred_check_branch
          %362 = sbr.rel (%p360) target = $region60
        $region59: #{tpu_custom_call.1} parent=55 // pred_region
          %363 = dma.done %s356, 4096
        $region60: #{tpu_custom_call.1} parent=55 // pred_fallthru
          _
        // Predicated region
        $region61: #{tpu_custom_call.1} parent=55 // pred_check
          %p364 = pneg %p74
        $region62: #{tpu_custom_call.1} parent=55 // pred_check_branch
          %366 = sbr.rel (%p364) target = $region64
        $region63: #{tpu_custom_call.1} parent=55 // pred_region
          %367 = dma.done [#allocation11], 4096
        $region64: #{tpu_custom_call.1} parent=55 // pred_fallthru
          _
        // Predicated region
        $region65: #{tpu_custom_call.1} parent=55 // pred_check
          %p368 = pneg %p116
        $region66: #{tpu_custom_call.1} parent=55 // pred_check_branch
          %370 = sbr.rel (%p368) target = $region68
        $region67: #{tpu_custom_call.1} parent=55 // pred_region
          %371 = dma.done [#allocation11], 4096
        $region68: #{tpu_custom_call.1} parent=55 // pred_fallthru
          _
        %s372 = sand.u32 %s40, 1
        %s373 = scalar_lea.sflag [#allocation8], %s372
        %s374 = sand.u32 %s40, 1
        %s375 = smul.addr %s374, 256
        %s376 = scalar_lea.vmem [#allocation7], %s375
        %p377 = pneg %p53
        %p378 = pneg %p50
        %p379 = pneg %p74
        %p380 = pneg %p71
        %p381 = pneg %p95
        %p382 = pneg %p92
        %p383 = pneg %p116
        %p384 = pneg %p113
        %p385 = pneg %p137
        %p386 = pneg %p134
        %p387 = pneg %p158
        %p388 = pneg %p155
        %p389 = pneg %p179
        %p390 = pneg %p176
        %p391 = pneg %p200
        %p392 = pneg %p197
        %p393 = pneg %p221
        %p394 = pneg %p218
        %p395 = pneg %p242
        %p396 = pneg %p239
        %p397 = pneg %p263
        %p398 = pneg %p260
        %s399 = smul.u32 16, %s32
        %p400 = scmp.eq.s32.totalorder %s32, 0
        // Predicated region
        $region69: #{tpu_custom_call.1} parent=55 // pred_check
          %p401 = pneg %p400
        $region70: #{tpu_custom_call.1} parent=55 // pred_check_branch
          %403 = sbr.rel (%p401) target = $region72
        $region71: #{tpu_custom_call.1} parent=55 // pred_region
          %vm404 = vcmask 0
          %405 = vst.msk [vmem:[#allocation2] sm:$0x1] %vm404, -inf
          %406 = vst.msk [vmem:[#allocation3] sm:$0x1] %vm404, 0.0
          %407 = vst [vmem:[#allocation4] sm:$0x1] 0.0
        $region72: #{tpu_custom_call.1} parent=55 // pred_fallthru
          _
        %v408 = vld [vmem:[%s359] sm:$0xff]
        %v409 = vld [vmem:[%s359 + $0x8] sm:$0xff]
        %v410 = vld [vmem:[%s359 + $0x10] sm:$0xff]
        %v411 = vld [vmem:[%s359 + $0x18] sm:$0xff]
        %v412 = vld [vmem:[%s359 + $0x20] sm:$0xff]
        %v413 = vld [vmem:[%s359 + $0x28] sm:$0xff]
        %v414 = vld [vmem:[%s359 + $0x30] sm:$0xff]
        %v415 = vld [vmem:[%s359 + $0x38] sm:$0xff]
        %v416 = vld [vmem:[%s359 + $0x40] sm:$0xff]
        %v417 = vld [vmem:[%s359 + $0x48] sm:$0xff]
        %v418 = vld [vmem:[%s359 + $0x50] sm:$0xff]
        %v419 = vld [vmem:[%s359 + $0x58] sm:$0xff]
        %v420 = vld [vmem:[%s359 + $0x60] sm:$0xff]
        %v421 = vld [vmem:[%s359 + $0x68] sm:$0xff]
        %v422 = vld [vmem:[%s359 + $0x70] sm:$0xff]
        %v423 = vld [vmem:[%s359 + $0x78] sm:$0xff]
        %v424 = vld [vmem:[%s359 + $0x80] sm:$0xff]
        %v425 = vld [vmem:[%s359 + $0x88] sm:$0xff]
        %v426 = vld [vmem:[%s359 + $0x90] sm:$0xff]
        %v427 = vld [vmem:[%s359 + $0x98] sm:$0xff]
        %v428 = vld [vmem:[%s359 + $0xa0] sm:$0xff]
        %v429 = vld [vmem:[%s359 + $0xa8] sm:$0xff]
        %v430 = vld [vmem:[%s359 + $0xb0] sm:$0xff]
        %v431 = vld [vmem:[%s359 + $0xb8] sm:$0xff]
        %v432 = vld [vmem:[%s359 + $0xc0] sm:$0xff]
        %v433 = vld [vmem:[%s359 + $0xc8] sm:$0xff]
        %v434 = vld [vmem:[%s359 + $0xd0] sm:$0xff]
        %v435 = vld [vmem:[%s359 + $0xd8] sm:$0xff]
        %v436 = vld [vmem:[%s359 + $0xe0] sm:$0xff]
        %v437 = vld [vmem:[%s359 + $0xe8] sm:$0xff]
        %v438 = vld [vmem:[%s359 + $0xf0] sm:$0xff]
        %v439 = vld [vmem:[%s359 + $0xf8] sm:$0xff]
        %v440 = vld [vmem:[#allocation10] sm:$0xff]
        %v441 = vld [vmem:[#allocation10 + $0x8] sm:$0xff]
        %v442 = vld [vmem:[#allocation10 + $0x10] sm:$0xff]
        %v443 = vld [vmem:[#allocation10 + $0x18] sm:$0xff]
        %v444 = vld [vmem:[#allocation10 + $0x20] sm:$0xff]
        %v445 = vld [vmem:[#allocation10 + $0x28] sm:$0xff]
        %v446 = vld [vmem:[#allocation10 + $0x30] sm:$0xff]
        %v447 = vld [vmem:[#allocation10 + $0x38] sm:$0xff]
        %v448 = vld [vmem:[#allocation10 + $0x40] sm:$0xff]
        %v449 = vld [vmem:[#allocation10 + $0x48] sm:$0xff]
        %v450 = vld [vmem:[#allocation10 + $0x50] sm:$0xff]
        %v451 = vld [vmem:[#allocation10 + $0x58] sm:$0xff]
        %v452 = vld [vmem:[#allocation10 + $0x60] sm:$0xff]
        %v453 = vld [vmem:[#allocation10 + $0x68] sm:$0xff]
        %v454 = vld [vmem:[#allocation10 + $0x70] sm:$0xff]
        %v455 = vld [vmem:[#allocation10 + $0x78] sm:$0xff]
        %v456 = vld [vmem:[#allocation10 + $0x80] sm:$0xff]
        %v457 = vld [vmem:[#allocation10 + $0x88] sm:$0xff]
        %v458 = vld [vmem:[#allocation10 + $0x90] sm:$0xff]
        %v459 = vld [vmem:[#allocation10 + $0x98] sm:$0xff]
        %v460 = vld [vmem:[#allocation10 + $0xa0] sm:$0xff]
        %v461 = vld [vmem:[#allocation10 + $0xa8] sm:$0xff]
        %v462 = vld [vmem:[#allocation10 + $0xb0] sm:$0xff]
        %v463 = vld [vmem:[#allocation10 + $0xb8] sm:$0xff]
        %v464 = vld [vmem:[#allocation10 + $0xc0] sm:$0xff]
        %v465 = vld [vmem:[#allocation10 + $0xc8] sm:$0xff]
        %v466 = vld [vmem:[#allocation10 + $0xd0] sm:$0xff]
        %v467 = vld [vmem:[#allocation10 + $0xd8] sm:$0xff]
        %v468 = vld [vmem:[#allocation10 + $0xe0] sm:$0xff]
        %v469 = vld [vmem:[#allocation10 + $0xe8] sm:$0xff]
        %v470 = vld [vmem:[#allocation10 + $0xf0] sm:$0xff]
        %v471 = vld [vmem:[#allocation10 + $0xf8] sm:$0xff]
        %v472 = vld [vmem:[%s2] sm:$0x1]
        %v474 = vlaneseq
        %v475 = vshrl.u32 %v474, 7
        %v476 = vsub.s32 0, %v475
        %v477 = vrot.slane %v472, %v476
        %479 = vmatprep.subr.mxu0 0.0
        %480 = vmatpush1.msra.mxu0 %v455
        %481 = vmatprep.subr.mxu0 0.0
        %482 = vmatpush1.msra.mxu0 %v454
        %483 = vmatprep.subr.mxu0 0.0
        %484 = vmatpush1.msra.mxu0 %v453
        %485 = vmatprep.subr.mxu0 0.0
        %486 = vmatpush1.msra.mxu0 %v452
        %487 = vmatprep.subr.mxu0 0.0
        %488 = vmatpush1.msra.mxu0 %v451
        %489 = vmatprep.subr.mxu0 0.0
        %490 = vmatpush1.msra.mxu0 %v450
        %491 = vmatprep.subr.mxu0 0.0
        %492 = vmatpush1.msra.mxu0 %v449
        %493 = vmatprep.subr.mxu0 0.0
        %494 = vmatpush1.msra.mxu0 %v448
        %495 = vmatprep.subr.mxu0 0.0
        %496 = vmatpush1.msra.mxu0 %v447
        %497 = vmatprep.subr.mxu0 0.0
        %498 = vmatpush1.msra.mxu0 %v446
        %499 = vmatprep.subr.mxu0 0.0
        %500 = vmatpush1.msra.mxu0 %v445
        %501 = vmatprep.subr.mxu0 0.0
        %502 = vmatpush1.msra.mxu0 %v444
        %503 = vmatprep.subr.mxu0 0.0
        %504 = vmatpush1.msra.mxu0 %v443
        %505 = vmatprep.subr.mxu0 0.0
        %506 = vmatpush1.msra.mxu0 %v442
        %507 = vmatprep.subr.mxu0 0.0
        %508 = vmatpush1.msra.mxu0 %v441
        %509 = vmatprep.subr.mxu0 0.0
        %510 = vmatpush1.msra.mxu0 %v440
        %511 = vmatprep.subr.mxu0 0.0
        %512 = vmatpush2.msra.mxu0 %v471
        %513 = vmatprep.subr.mxu0 0.0
        %514 = vmatpush2.msra.mxu0 %v470
        %515 = vmatprep.subr.mxu0 0.0
        %516 = vmatpush2.msra.mxu0 %v469
        %517 = vmatprep.subr.mxu0 0.0
        %518 = vmatpush2.msra.mxu0 %v468
        %519 = vmatprep.subr.mxu0 0.0
        %520 = vmatpush2.msra.mxu0 %v467
        %521 = vmatprep.subr.mxu0 0.0
        %522 = vmatpush2.msra.mxu0 %v466
        %523 = vmatprep.subr.mxu0 0.0
        %524 = vmatpush2.msra.mxu0 %v465
        %525 = vmatprep.subr.mxu0 0.0
        %526 = vmatpush2.msra.mxu0 %v464
        %527 = vmatprep.subr.mxu0 0.0
        %528 = vmatpush2.msra.mxu0 %v463
        %529 = vmatprep.subr.mxu0 0.0
        %530 = vmatpush2.msra.mxu0 %v462
        %531 = vmatprep.subr.mxu0 0.0
        %532 = vmatpush2.msra.mxu0 %v461
        %533 = vmatprep.subr.mxu0 0.0
        %534 = vmatpush2.msra.mxu0 %v460
        %535 = vmatprep.subr.mxu0 0.0
        %536 = vmatpush2.msra.mxu0 %v459
        %537 = vmatprep.subr.mxu0 0.0
        %538 = vmatpush2.msra.mxu0 %v458
        %539 = vmatprep.subr.mxu0 0.0
        %540 = vmatpush2.msra.mxu0 %v457
        %541 = vmatprep.subr.mxu0 0.0
        %542 = vmatpush2.msra.mxu0 %v456
        %543 = vmatprep.mubr.f32.mxu0 %v409
        %544 = vmatmul.mubr.f32.gmra.mxu0 %v408
        %v545 = vpop.f32.mrf.mxu0
        %v546 = vadd.f32 %v477, %v545
        %v547 = vpop.f32.mrf.mxu0
        %548 = vmatprep.mubr.f32.mxu0 %v411
        %549 = vmatmul.mubr.f32.gmra.mxu0 %v410
        %v550 = vpop.f32.mrf.mxu0
        %v551 = vadd.f32 %v477, %v550
        %v552 = vpop.f32.mrf.mxu0
        %553 = vmatprep.mubr.f32.mxu0 %v413
        %554 = vmatmul.mubr.f32.gmra.mxu0 %v412
        %v555 = vpop.f32.mrf.mxu0
        %v556 = vadd.f32 %v477, %v555
        %v557 = vpop.f32.mrf.mxu0
        %558 = vmatprep.mubr.f32.mxu0 %v415
        %559 = vmatmul.mubr.f32.gmra.mxu0 %v414
        %v560 = vpop.f32.mrf.mxu0
        %v561 = vadd.f32 %v477, %v560
        %v562 = vpop.f32.mrf.mxu0
        %563 = vmatprep.mubr.f32.mxu0 %v417
        %564 = vmatmul.mubr.f32.gmra.mxu0 %v416
        %v565 = vpop.f32.mrf.mxu0
        %v566 = vadd.f32 %v477, %v565
        %v567 = vpop.f32.mrf.mxu0
        %568 = vmatprep.mubr.f32.mxu0 %v419
        %569 = vmatmul.mubr.f32.gmra.mxu0 %v418
        %v570 = vpop.f32.mrf.mxu0
        %v571 = vadd.f32 %v477, %v570
        %v572 = vpop.f32.mrf.mxu0
        %573 = vmatprep.mubr.f32.mxu0 %v421
        %574 = vmatmul.mubr.f32.gmra.mxu0 %v420
        %v575 = vpop.f32.mrf.mxu0
        %v576 = vadd.f32 %v477, %v575
        %v577 = vpop.f32.mrf.mxu0
        %578 = vmatprep.mubr.f32.mxu0 %v423
        %579 = vmatmul.mubr.f32.gmra.mxu0 %v422
        %v580 = vpop.f32.mrf.mxu0
        %v581 = vadd.f32 %v477, %v580
        %v582 = vpop.f32.mrf.mxu0
        %583 = vmatprep.mubr.f32.mxu0 %v425
        %584 = vmatmul.mubr.f32.gmra.mxu0 %v424
        %v585 = vpop.f32.mrf.mxu0
        %v586 = vadd.f32 %v477, %v585
        %v587 = vpop.f32.mrf.mxu0
        %588 = vmatprep.mubr.f32.mxu0 %v427
        %589 = vmatmul.mubr.f32.gmra.mxu0 %v426
        %v590 = vpop.f32.mrf.mxu0
        %v591 = vadd.f32 %v477, %v590
        %v592 = vpop.f32.mrf.mxu0
        %593 = vmatprep.mubr.f32.mxu0 %v429
        %594 = vmatmul.mubr.f32.gmra.mxu0 %v428
        %v595 = vpop.f32.mrf.mxu0
        %v596 = vadd.f32 %v477, %v595
        %v597 = vpop.f32.mrf.mxu0
        %598 = vmatprep.mubr.f32.mxu0 %v431
        %599 = vmatmul.mubr.f32.gmra.mxu0 %v430
        %v600 = vpop.f32.mrf.mxu0
        %v601 = vadd.f32 %v477, %v600
        %v602 = vpop.f32.mrf.mxu0
        %603 = vmatprep.mubr.f32.mxu0 %v433
        %604 = vmatmul.mubr.f32.gmra.mxu0 %v432
        %v605 = vpop.f32.mrf.mxu0
        %v606 = vadd.f32 %v477, %v605
        %v607 = vpop.f32.mrf.mxu0
        %608 = vmatprep.mubr.f32.mxu0 %v435
        %609 = vmatmul.mubr.f32.gmra.mxu0 %v434
        %v610 = vpop.f32.mrf.mxu0
        %v611 = vadd.f32 %v477, %v610
        %v612 = vpop.f32.mrf.mxu0
        %613 = vmatprep.mubr.f32.mxu0 %v437
        %614 = vmatmul.mubr.f32.gmra.mxu0 %v436
        %v615 = vpop.f32.mrf.mxu0
        %v616 = vadd.f32 %v477, %v615
        %v617 = vpop.f32.mrf.mxu0
        %618 = vmatprep.mubr.f32.mxu0 %v439
        %619 = vmatmul.mubr.f32.gmra.mxu0 %v438
        %v620 = vpop.f32.mrf.mxu0
        %v621 = vadd.f32 %v477, %v620
        %v622 = vpop.f32.mrf.mxu0
        %623 = vdwg.mxu0
        %v624 = vmax.f32 %v546, 0.0
        %v625 = vmax.f32 %v551, 0.0
        %v626 = vmax.f32 %v556, 0.0
        %v627 = vmax.f32 %v561, 0.0
        %v628 = vmax.f32 %v566, 0.0
        %v629 = vmax.f32 %v571, 0.0
        %v630 = vmax.f32 %v576, 0.0
        %v631 = vmax.f32 %v581, 0.0
        %v632 = vmax.f32 %v586, 0.0
        %v633 = vmax.f32 %v591, 0.0
        %v634 = vmax.f32 %v596, 0.0
        %v635 = vmax.f32 %v601, 0.0
        %v636 = vmax.f32 %v606, 0.0
        %v637 = vmax.f32 %v611, 0.0
        %v638 = vmax.f32 %v616, 0.0
        %v639 = vmax.f32 %v621, 0.0
        %v640 = vld [vmem:[#allocation12] sm:$0xff]
        %v641 = vld [vmem:[#allocation12 + $0x8] sm:$0xff]
        %v642 = vld [vmem:[#allocation12 + $0x10] sm:$0xff]
        %v643 = vld [vmem:[#allocation12 + $0x18] sm:$0xff]
        %v644 = vld [vmem:[#allocation12 + $0x20] sm:$0xff]
        %v645 = vld [vmem:[#allocation12 + $0x28] sm:$0xff]
        %v646 = vld [vmem:[#allocation12 + $0x30] sm:$0xff]
        %v647 = vld [vmem:[#allocation12 + $0x38] sm:$0xff]
        %v648 = vld [vmem:[#allocation12 + $0x40] sm:$0xff]
        %v649 = vld [vmem:[#allocation12 + $0x48] sm:$0xff]
        %v650 = vld [vmem:[#allocation12 + $0x50] sm:$0xff]
        %v651 = vld [vmem:[#allocation12 + $0x58] sm:$0xff]
        %v652 = vld [vmem:[#allocation12 + $0x60] sm:$0xff]
        %v653 = vld [vmem:[#allocation12 + $0x68] sm:$0xff]
        %v654 = vld [vmem:[#allocation12 + $0x70] sm:$0xff]
        %v655 = vld [vmem:[#allocation12 + $0x78] sm:$0xff]
        %v656 = vld [vmem:[#allocation12 + $0x80] sm:$0xff]
        %v657 = vld [vmem:[#allocation12 + $0x88] sm:$0xff]
        %v658 = vld [vmem:[#allocation12 + $0x90] sm:$0xff]
        %v659 = vld [vmem:[#allocation12 + $0x98] sm:$0xff]
        %v660 = vld [vmem:[#allocation12 + $0xa0] sm:$0xff]
        %v661 = vld [vmem:[#allocation12 + $0xa8] sm:$0xff]
        %v662 = vld [vmem:[#allocation12 + $0xb0] sm:$0xff]
        %v663 = vld [vmem:[#allocation12 + $0xb8] sm:$0xff]
        %v664 = vld [vmem:[#allocation12 + $0xc0] sm:$0xff]
        %v665 = vld [vmem:[#allocation12 + $0xc8] sm:$0xff]
        %v666 = vld [vmem:[#allocation12 + $0xd0] sm:$0xff]
        %v667 = vld [vmem:[#allocation12 + $0xd8] sm:$0xff]
        %v668 = vld [vmem:[#allocation12 + $0xe0] sm:$0xff]
        %v669 = vld [vmem:[#allocation12 + $0xe8] sm:$0xff]
        %v670 = vld [vmem:[#allocation12 + $0xf0] sm:$0xff]
        %v671 = vld [vmem:[#allocation12 + $0xf8] sm:$0xff]
        %v672 = vld [vmem:[%s4] sm:$0x3]
        %v674 = vlaneseq
        %v675 = vshrl.u32 %v674, 7
        %v676 = vsub.s32 0, %v675
        %v677 = vrot.slane %v672, %v676
        %v678 = vlaneseq
        %v679 = vshrl.u32 %v678, 7
        %v680 = vsub.s32 1, %v679
        %v681 = vrot.slane %v672, %v680
        %684 = vmatprep.subr.mxu0 %v671
        %685 = vmatpush1.msra.mxu0 %v670
        %686 = vmatprep.subr.mxu0 %v669
        %687 = vmatpush1.msra.mxu0 %v668
        %688 = vmatprep.subr.mxu0 %v667
        %689 = vmatpush1.msra.mxu0 %v666
        %690 = vmatprep.subr.mxu0 %v665
        %691 = vmatpush1.msra.mxu0 %v664
        %692 = vmatprep.subr.mxu0 %v663
        %693 = vmatpush1.msra.mxu0 %v662
        %694 = vmatprep.subr.mxu0 %v661
        %695 = vmatpush1.msra.mxu0 %v660
        %696 = vmatprep.subr.mxu0 %v659
        %697 = vmatpush1.msra.mxu0 %v658
        %698 = vmatprep.subr.mxu0 %v657
        %699 = vmatpush1.msra.mxu0 %v656
        %700 = vmatprep.subr.mxu0 %v655
        %701 = vmatpush1.msra.mxu0 %v654
        %702 = vmatprep.subr.mxu0 %v653
        %703 = vmatpush1.msra.mxu0 %v652
        %704 = vmatprep.subr.mxu0 %v651
        %705 = vmatpush1.msra.mxu0 %v650
        %706 = vmatprep.subr.mxu0 %v649
        %707 = vmatpush1.msra.mxu0 %v648
        %708 = vmatprep.subr.mxu0 %v647
        %709 = vmatpush1.msra.mxu0 %v646
        %710 = vmatprep.subr.mxu0 %v645
        %711 = vmatpush1.msra.mxu0 %v644
        %712 = vmatprep.subr.mxu0 %v643
        %713 = vmatpush1.msra.mxu0 %v642
        %714 = vmatprep.subr.mxu0 %v641
        %715 = vmatpush1.msra.mxu0 %v640
        %716 = vmatprep.subr.mxu0 0.0
        %717 = vmatpush2.msra.mxu0 0.0
        %718 = vmatprep.subr.mxu0 0.0
        %719 = vmatpush2.msra.mxu0 0.0
        %720 = vmatprep.subr.mxu0 0.0
        %721 = vmatpush2.msra.mxu0 0.0
        %722 = vmatprep.subr.mxu0 0.0
        %723 = vmatpush2.msra.mxu0 0.0
        %724 = vmatprep.subr.mxu0 0.0
        %725 = vmatpush2.msra.mxu0 0.0
        %726 = vmatprep.subr.mxu0 0.0
        %727 = vmatpush2.msra.mxu0 0.0
        %728 = vmatprep.subr.mxu0 0.0
        %729 = vmatpush2.msra.mxu0 0.0
        %730 = vmatprep.subr.mxu0 0.0
        %731 = vmatpush2.msra.mxu0 0.0
        %732 = vmatprep.subr.mxu0 0.0
        %733 = vmatpush2.msra.mxu0 0.0
        %734 = vmatprep.subr.mxu0 0.0
        %735 = vmatpush2.msra.mxu0 0.0
        %736 = vmatprep.subr.mxu0 0.0
        %737 = vmatpush2.msra.mxu0 0.0
        %738 = vmatprep.subr.mxu0 0.0
        %739 = vmatpush2.msra.mxu0 0.0
        %740 = vmatprep.subr.mxu0 0.0
        %741 = vmatpush2.msra.mxu0 0.0
        %742 = vmatprep.subr.mxu0 0.0
        %743 = vmatpush2.msra.mxu0 0.0
        %744 = vmatprep.subr.mxu0 0.0
        %745 = vmatpush2.msra.mxu0 0.0
        %746 = vmatprep.subr.mxu0 0.0
        %747 = vmatpush2.msra.mxu0 0.0
        %748 = vmatprep.mubr.f32.mxu0 0.0
        %749 = vmatmul.mubr.f32.gmra.mxu0 %v624
        %v750 = vpop.f32.mrf.mxu0
        %v751 = vadd.f32 %v677, %v750
        %v752 = vpop.f32.mrf.mxu0
        %v753 = vadd.f32 %v681, %v752
        %754 = vmatprep.mubr.f32.mxu0 0.0
        %755 = vmatmul.mubr.f32.gmra.mxu0 %v625
        %v756 = vpop.f32.mrf.mxu0
        %v757 = vadd.f32 %v677, %v756
        %v758 = vpop.f32.mrf.mxu0
        %v759 = vadd.f32 %v681, %v758
        %760 = vmatprep.mubr.f32.mxu0 0.0
        %761 = vmatmul.mubr.f32.gmra.mxu0 %v626
        %v762 = vpop.f32.mrf.mxu0
        %v763 = vadd.f32 %v677, %v762
        %v764 = vpop.f32.mrf.mxu0
        %v765 = vadd.f32 %v681, %v764
        %766 = vmatprep.mubr.f32.mxu0 0.0
        %767 = vmatmul.mubr.f32.gmra.mxu0 %v627
        %v768 = vpop.f32.mrf.mxu0
        %v769 = vadd.f32 %v677, %v768
        %v770 = vpop.f32.mrf.mxu0
        %v771 = vadd.f32 %v681, %v770
        %772 = vmatprep.mubr.f32.mxu0 0.0
        %773 = vmatmul.mubr.f32.gmra.mxu0 %v628
        %v774 = vpop.f32.mrf.mxu0
        %v775 = vadd.f32 %v677, %v774
        %v776 = vpop.f32.mrf.mxu0
        %v777 = vadd.f32 %v681, %v776
        %778 = vmatprep.mubr.f32.mxu0 0.0
        %779 = vmatmul.mubr.f32.gmra.mxu0 %v629
        %v780 = vpop.f32.mrf.mxu0
        %v781 = vadd.f32 %v677, %v780
        %v782 = vpop.f32.mrf.mxu0
        %v783 = vadd.f32 %v681, %v782
        %784 = vmatprep.mubr.f32.mxu0 0.0
        %785 = vmatmul.mubr.f32.gmra.mxu0 %v630
        %v786 = vpop.f32.mrf.mxu0
        %v787 = vadd.f32 %v677, %v786
        %v788 = vpop.f32.mrf.mxu0
        %v789 = vadd.f32 %v681, %v788
        %790 = vmatprep.mubr.f32.mxu0 0.0
        %791 = vmatmul.mubr.f32.gmra.mxu0 %v631
        %v792 = vpop.f32.mrf.mxu0
        %v793 = vadd.f32 %v677, %v792
        %v794 = vpop.f32.mrf.mxu0
        %v795 = vadd.f32 %v681, %v794
        %796 = vmatprep.mubr.f32.mxu0 0.0
        %797 = vmatmul.mubr.f32.gmra.mxu0 %v632
        %v798 = vpop.f32.mrf.mxu0
        %v799 = vadd.f32 %v677, %v798
        %v800 = vpop.f32.mrf.mxu0
        %v801 = vadd.f32 %v681, %v800
        %802 = vmatprep.mubr.f32.mxu0 0.0
        %803 = vmatmul.mubr.f32.gmra.mxu0 %v633
        %v804 = vpop.f32.mrf.mxu0
        %v805 = vadd.f32 %v677, %v804
        %v806 = vpop.f32.mrf.mxu0
        %v807 = vadd.f32 %v681, %v806
        %808 = vmatprep.mubr.f32.mxu0 0.0
        %809 = vmatmul.mubr.f32.gmra.mxu0 %v634
        %v810 = vpop.f32.mrf.mxu0
        %v811 = vadd.f32 %v677, %v810
        %v812 = vpop.f32.mrf.mxu0
        %v813 = vadd.f32 %v681, %v812
        %814 = vmatprep.mubr.f32.mxu0 0.0
        %815 = vmatmul.mubr.f32.gmra.mxu0 %v635
        %v816 = vpop.f32.mrf.mxu0
        %v817 = vadd.f32 %v677, %v816
        %v818 = vpop.f32.mrf.mxu0
        %v819 = vadd.f32 %v681, %v818
        %820 = vmatprep.mubr.f32.mxu0 0.0
        %821 = vmatmul.mubr.f32.gmra.mxu0 %v636
        %v822 = vpop.f32.mrf.mxu0
        %v823 = vadd.f32 %v677, %v822
        %v824 = vpop.f32.mrf.mxu0
        %v825 = vadd.f32 %v681, %v824
        %826 = vmatprep.mubr.f32.mxu0 0.0
        %827 = vmatmul.mubr.f32.gmra.mxu0 %v637
        %v828 = vpop.f32.mrf.mxu0
        %v829 = vadd.f32 %v677, %v828
        %v830 = vpop.f32.mrf.mxu0
        %v831 = vadd.f32 %v681, %v830
        %832 = vmatprep.mubr.f32.mxu0 0.0
        %833 = vmatmul.mubr.f32.gmra.mxu0 %v638
        %v834 = vpop.f32.mrf.mxu0
        %v835 = vadd.f32 %v677, %v834
        %v836 = vpop.f32.mrf.mxu0
        %v837 = vadd.f32 %v681, %v836
        %838 = vmatprep.mubr.f32.mxu0 0.0
        %839 = vmatmul.mubr.f32.gmra.mxu0 %v639
        %v840 = vpop.f32.mrf.mxu0
        %v841 = vadd.f32 %v677, %v840
        %v842 = vpop.f32.mrf.mxu0
        %v843 = vadd.f32 %v681, %v842
        %844 = vdwg.mxu0
        %v845 = vtanh.pop %v751
        %v846 = vtanh.pop %v757
        %v847 = vtanh.pop %v763
        %v848 = vtanh.pop %v769
        %v849 = vtanh.pop %v775
        %v850 = vtanh.pop %v781
        %v851 = vtanh.pop %v787
        %v852 = vtanh.pop %v793
        %v853 = vtanh.pop %v799
        %v854 = vtanh.pop %v805
        %v855 = vtanh.pop %v811
        %v856 = vtanh.pop %v817
        %v857 = vtanh.pop %v823
        %v858 = vtanh.pop %v829
        %v859 = vtanh.pop %v835
        %v860 = vtanh.pop %v841
        %v861 = vxor.u32 %v753, 2147483648
        %v862 = vxor.u32 %v759, 2147483648
        %v863 = vxor.u32 %v765, 2147483648
        %v864 = vxor.u32 %v771, 2147483648
        %v865 = vxor.u32 %v777, 2147483648
        %v866 = vxor.u32 %v783, 2147483648
        %v867 = vxor.u32 %v789, 2147483648
        %v868 = vxor.u32 %v795, 2147483648
        %v869 = vxor.u32 %v801, 2147483648
        %v870 = vxor.u32 %v807, 2147483648
        %v871 = vxor.u32 %v813, 2147483648
        %v872 = vxor.u32 %v819, 2147483648
        %v873 = vxor.u32 %v825, 2147483648
        %v874 = vxor.u32 %v831, 2147483648
        %v875 = vxor.u32 %v837, 2147483648
        %v876 = vxor.u32 %v843, 2147483648
        %v877 = vmul.f32 %v861, 1.442695
        %v878 = vpow.pop %v877
        %v879 = vmul.f32 %v862, 1.442695
        %v880 = vpow.pop %v879
        %v881 = vmul.f32 %v863, 1.442695
        %v882 = vpow.pop %v881
        %v883 = vmul.f32 %v864, 1.442695
        %v884 = vpow.pop %v883
        %v885 = vmul.f32 %v865, 1.442695
        %v886 = vpow.pop %v885
        %v887 = vmul.f32 %v866, 1.442695
        %v888 = vpow.pop %v887
        %v889 = vmul.f32 %v867, 1.442695
        %v890 = vpow.pop %v889
        %v891 = vmul.f32 %v868, 1.442695
        %v892 = vpow.pop %v891
        %v893 = vmul.f32 %v869, 1.442695
        %v894 = vpow.pop %v893
        %v895 = vmul.f32 %v870, 1.442695
        %v896 = vpow.pop %v895
        %v897 = vmul.f32 %v871, 1.442695
        %v898 = vpow.pop %v897
        %v899 = vmul.f32 %v872, 1.442695
        %v900 = vpow.pop %v899
        %v901 = vmul.f32 %v873, 1.442695
        %v902 = vpow.pop %v901
        %v903 = vmul.f32 %v874, 1.442695
        %v904 = vpow.pop %v903
        %v905 = vmul.f32 %v875, 1.442695
        %v906 = vpow.pop %v905
        %v907 = vmul.f32 %v876, 1.442695
        %v908 = vpow.pop %v907
        %v909 = vadd.f32 %v878, 1.0
        %v910 = vadd.f32 %v880, 1.0
        %v911 = vadd.f32 %v882, 1.0
        %v912 = vadd.f32 %v884, 1.0
        %v913 = vadd.f32 %v886, 1.0
        %v914 = vadd.f32 %v888, 1.0
        %v915 = vadd.f32 %v890, 1.0
        %v916 = vadd.f32 %v892, 1.0
        %v917 = vadd.f32 %v894, 1.0
        %v918 = vadd.f32 %v896, 1.0
        %v919 = vadd.f32 %v898, 1.0
        %v920 = vadd.f32 %v900, 1.0
        %v921 = vadd.f32 %v902, 1.0
        %v922 = vadd.f32 %v904, 1.0
        %v923 = vadd.f32 %v906, 1.0
        %v924 = vadd.f32 %v908, 1.0
        %v925 = vrcp.pop %v909
        %v926 = vmul.f32 1.0, %v925
        %v927 = vrcp.pop %v910
        %v928 = vmul.f32 1.0, %v927
        %v929 = vrcp.pop %v911
        %v930 = vmul.f32 1.0, %v929
        %v931 = vrcp.pop %v912
        %v932 = vmul.f32 1.0, %v931
        %v933 = vrcp.pop %v913
        %v934 = vmul.f32 1.0, %v933
        %v935 = vrcp.pop %v914
        %v936 = vmul.f32 1.0, %v935
        %v937 = vrcp.pop %v915
        %v938 = vmul.f32 1.0, %v937
        %v939 = vrcp.pop %v916
        %v940 = vmul.f32 1.0, %v939
        %v941 = vrcp.pop %v917
        %v942 = vmul.f32 1.0, %v941
        %v943 = vrcp.pop %v918
        %v944 = vmul.f32 1.0, %v943
        %v945 = vrcp.pop %v919
        %v946 = vmul.f32 1.0, %v945
        %v947 = vrcp.pop %v920
        %v948 = vmul.f32 1.0, %v947
        %v949 = vrcp.pop %v921
        %v950 = vmul.f32 1.0, %v949
        %v951 = vrcp.pop %v922
        %v952 = vmul.f32 1.0, %v951
        %v953 = vrcp.pop %v923
        %v954 = vmul.f32 1.0, %v953
        %v955 = vrcp.pop %v924
        %v956 = vmul.f32 1.0, %v955
        %v957 = vmul.f32 %v845, %v926
        %v958 = vmul.f32 %v846, %v928
        %v959 = vmul.f32 %v847, %v930
        %v960 = vmul.f32 %v848, %v932
        %v961 = vmul.f32 %v849, %v934
        %v962 = vmul.f32 %v850, %v936
        %v963 = vmul.f32 %v851, %v938
        %v964 = vmul.f32 %v852, %v940
        %v965 = vmul.f32 %v853, %v942
        %v966 = vmul.f32 %v854, %v944
        %v967 = vmul.f32 %v855, %v946
        %v968 = vmul.f32 %v856, %v948
        %v969 = vmul.f32 %v857, %v950
        %v970 = vmul.f32 %v858, %v952
        %v971 = vmul.f32 %v859, %v954
        %v972 = vmul.f32 %v860, %v956
        %v973 = vld [vmem:[%s5] sm:$0x1]
        %v974 = vld [vmem:[#allocation5] sm:$0x1]
        %976 = vset.pattern.permute.xlu0 0
        %977 = vperm.xlu0 %976, %v974
        %v978 = vpop.permute.xlu0 %977
        %v980 = vlaneseq
        %v981 = vshrl.u32 %v980, 7
        %v982 = vsub.s32 0, %v981
        %v983 = vrot.slane %v978, %v982
        %984 = vmatprep.subr.mxu0 0.0
        %985 = vmatpush1.xpose.msra.mxu0 %v972
        %986 = vmatprep.subr.mxu0 0.0
        %987 = vmatpush1.xpose.msra.mxu0 %v971
        %988 = vmatprep.subr.mxu0 0.0
        %989 = vmatpush1.xpose.msra.mxu0 %v970
        %990 = vmatprep.subr.mxu0 0.0
        %991 = vmatpush1.xpose.msra.mxu0 %v969
        %992 = vmatprep.subr.mxu0 0.0
        %993 = vmatpush1.xpose.msra.mxu0 %v968
        %994 = vmatprep.subr.mxu0 0.0
        %995 = vmatpush1.xpose.msra.mxu0 %v967
        %996 = vmatprep.subr.mxu0 0.0
        %997 = vmatpush1.xpose.msra.mxu0 %v966
        %998 = vmatprep.subr.mxu0 0.0
        %999 = vmatpush1.xpose.msra.mxu0 %v965
        %1000 = vmatprep.subr.mxu0 0.0
        %1001 = vmatpush1.xpose.msra.mxu0 %v964
        %1002 = vmatprep.subr.mxu0 0.0
        %1003 = vmatpush1.xpose.msra.mxu0 %v963
        %1004 = vmatprep.subr.mxu0 0.0
        %1005 = vmatpush1.xpose.msra.mxu0 %v962
        %1006 = vmatprep.subr.mxu0 0.0
        %1007 = vmatpush1.xpose.msra.mxu0 %v961
        %1008 = vmatprep.subr.mxu0 0.0
        %1009 = vmatpush1.xpose.msra.mxu0 %v960
        %1010 = vmatprep.subr.mxu0 0.0
        %1011 = vmatpush1.xpose.msra.mxu0 %v959
        %1012 = vmatprep.subr.mxu0 0.0
        %1013 = vmatpush1.xpose.msra.mxu0 %v958
        %1014 = vmatprep.subr.mxu0 0.0
        %1015 = vmatpush1.xpose.msra.mxu0 %v957
        %1016 = vmatprep.subr.mxu0 0.0
        %1017 = vmatpush2.xpose.msra.mxu0 0.0
        %1018 = vmatprep.subr.mxu0 0.0
        %1019 = vmatpush2.xpose.msra.mxu0 0.0
        %1020 = vmatprep.subr.mxu0 0.0
        %1021 = vmatpush2.xpose.msra.mxu0 0.0
        %1022 = vmatprep.subr.mxu0 0.0
        %1023 = vmatpush2.xpose.msra.mxu0 0.0
        %1024 = vmatprep.subr.mxu0 0.0
        %1025 = vmatpush2.xpose.msra.mxu0 0.0
        %1026 = vmatprep.subr.mxu0 0.0
        %1027 = vmatpush2.xpose.msra.mxu0 0.0
        %1028 = vmatprep.subr.mxu0 0.0
        %1029 = vmatpush2.xpose.msra.mxu0 0.0
        %1030 = vmatprep.subr.mxu0 0.0
        %1031 = vmatpush2.xpose.msra.mxu0 0.0
        %1032 = vmatprep.subr.mxu0 0.0
        %1033 = vmatpush2.xpose.msra.mxu0 0.0
        %1034 = vmatprep.subr.mxu0 0.0
        %1035 = vmatpush2.xpose.msra.mxu0 0.0
        %1036 = vmatprep.subr.mxu0 0.0
        %1037 = vmatpush2.xpose.msra.mxu0 0.0
        %1038 = vmatprep.subr.mxu0 0.0
        %1039 = vmatpush2.xpose.msra.mxu0 0.0
        %1040 = vmatprep.subr.mxu0 0.0
        %1041 = vmatpush2.xpose.msra.mxu0 0.0
        %1042 = vmatprep.subr.mxu0 0.0
        %1043 = vmatpush2.xpose.msra.mxu0 0.0
        %1044 = vmatprep.subr.mxu0 0.0
        %1045 = vmatpush2.xpose.msra.mxu0 0.0
        %1046 = vmatprep.subr.mxu0 0.0
        %1047 = vmatpush2.xpose.msra.mxu0 0.0
        %1048 = vmatprep.mubr.f32.mxu0 0.0
        %1049 = vmatmul.mubr.f32.gmra.mxu0 %v973
        %v1050 = vpop.f32.mrf.mxu0
        %v1051 = vadd.f32 %v983, %v1050
        %v1052 = vpop.f32.mrf.mxu0
        %1053 = vdwg.mxu0
        %s1054 = scalar_lea.vmem [#allocation14], %s32
        %1055 = vst [vmem:[%s1054] sm:$0x1] %v1051
        %v1056 = vld [vmem:[#allocation2] sm:$0x1]
        %vm1057 = vcmask 1040384
        %v1058 = vsel %vm1057, %v1051, -inf
        %1059 = vmax.xlane.f32.xlu0 %v1058
        %v1060 = vpop.xlane.xlu0 %1059
        %v1061 = vmax.f32 %v1056, %v1060
        %v1062 = vsub.f32 %v1056, %v1061
        %v1063 = vmul.f32 %v1062, 1.442695
        %v1064 = vpow.pop %v1063
        %1066 = vset.pattern.permute.xlu0 0
        %1067 = vperm.xlu0 %1066, %v1061
        %v1068 = vpop.permute.xlu0 %1067
        %v1070 = vlaneseq
        %v1071 = vshrl.u32 %v1070, 7
        %v1072 = vsub.s32 0, %v1071
        %v1073 = vrot.slane %v1068, %v1072
        %v1074 = vsub.f32 %v1051, %v1073
        %v1075 = vmul.f32 %v1074, 1.442695
        %v1076 = vpow.pop %v1075
        %v1077 = vld [vmem:[#allocation3] sm:$0x1]
        %v1078 = vmul.f32 %v1064, %v1077
        %v1079 = vsel %vm1057, %v1076, 0.0
        %1080 = vadd.xlane.f32.xlu0 %v1079
        %v1081 = vpop.xlane.xlu0 %1080
        %v1082 = vadd.f32 %v1078, %v1081
        %vm1083 = vcmask 0
        %1084 = vst.msk [vmem:[#allocation3] sm:$0x1] %vm1083, %v1082
        %v1085 = vld [vmem:[#allocation4] sm:$0x1]
        %1087 = vset.pattern.permute.xlu0 0
        %1088 = vperm.xlu0 %1087, %v1064
        %v1089 = vpop.permute.xlu0 %1088
        %v1091 = vlaneseq
        %v1092 = vshrl.u32 %v1091, 7
        %v1093 = vsub.s32 0, %v1092
        %v1094 = vrot.slane %v1089, %v1093
        %v1095 = vmul.f32 %v1094, %v1085
        %1096 = vmatprep.subr.mxu0 0.0
        %1097 = vmatpush1.msra.mxu0 %v639
        %1098 = vmatprep.subr.mxu0 0.0
        %1099 = vmatpush1.msra.mxu0 %v638
        %1100 = vmatprep.subr.mxu0 0.0
        %1101 = vmatpush1.msra.mxu0 %v637
        %1102 = vmatprep.subr.mxu0 0.0
        %1103 = vmatpush1.msra.mxu0 %v636
        %1104 = vmatprep.subr.mxu0 0.0
        %1105 = vmatpush1.msra.mxu0 %v635
        %1106 = vmatprep.subr.mxu0 0.0
        %1107 = vmatpush1.msra.mxu0 %v634
        %1108 = vmatprep.subr.mxu0 0.0
        %1109 = vmatpush1.msra.mxu0 %v633
        %1110 = vmatprep.subr.mxu0 0.0
        %1111 = vmatpush1.msra.mxu0 %v632
        %1112 = vmatprep.subr.mxu0 0.0
        %1113 = vmatpush1.msra.mxu0 %v631
        %1114 = vmatprep.subr.mxu0 0.0
        %1115 = vmatpush1.msra.mxu0 %v630
        %1116 = vmatprep.subr.mxu0 0.0
        %1117 = vmatpush1.msra.mxu0 %v629
        %1118 = vmatprep.subr.mxu0 0.0
        %1119 = vmatpush1.msra.mxu0 %v628
        %1120 = vmatprep.subr.mxu0 0.0
        %1121 = vmatpush1.msra.mxu0 %v627
        %1122 = vmatprep.subr.mxu0 0.0
        %1123 = vmatpush1.msra.mxu0 %v626
        %1124 = vmatprep.subr.mxu0 0.0
        %1125 = vmatpush1.msra.mxu0 %v625
        %1126 = vmatprep.subr.mxu0 0.0
        %1127 = vmatpush1.msra.mxu0 %v624
        %1128 = vmatprep.subr.mxu0 0.0
        %1129 = vmatpush2.msra.mxu0 0.0
        %1130 = vmatprep.subr.mxu0 0.0
        %1131 = vmatpush2.msra.mxu0 0.0
        %1132 = vmatprep.subr.mxu0 0.0
        %1133 = vmatpush2.msra.mxu0 0.0
        %1134 = vmatprep.subr.mxu0 0.0
        %1135 = vmatpush2.msra.mxu0 0.0
        %1136 = vmatprep.subr.mxu0 0.0
        %1137 = vmatpush2.msra.mxu0 0.0
        %1138 = vmatprep.subr.mxu0 0.0
        %1139 = vmatpush2.msra.mxu0 0.0
        %1140 = vmatprep.subr.mxu0 0.0
        %1141 = vmatpush2.msra.mxu0 0.0
        %1142 = vmatprep.subr.mxu0 0.0
        %1143 = vmatpush2.msra.mxu0 0.0
        %1144 = vmatprep.subr.mxu0 0.0
        %1145 = vmatpush2.msra.mxu0 0.0
        %1146 = vmatprep.subr.mxu0 0.0
        %1147 = vmatpush2.msra.mxu0 0.0
        %1148 = vmatprep.subr.mxu0 0.0
        %1149 = vmatpush2.msra.mxu0 0.0
        %1150 = vmatprep.subr.mxu0 0.0
        %1151 = vmatpush2.msra.mxu0 0.0
        %1152 = vmatprep.subr.mxu0 0.0
        %1153 = vmatpush2.msra.mxu0 0.0
        %1154 = vmatprep.subr.mxu0 0.0
        %1155 = vmatpush2.msra.mxu0 0.0
        %1156 = vmatprep.subr.mxu0 0.0
        %1157 = vmatpush2.msra.mxu0 0.0
        %1158 = vmatprep.subr.mxu0 0.0
        %1159 = vmatpush2.msra.mxu0 0.0
        %1160 = vmatprep.mubr.f32.mxu0 0.0
        %1161 = vmatmul.mubr.f32.gmra.mxu0 %v1076
        %v1162 = vpop.f32.mrf.mxu0
        %v1163 = vadd.f32 0.0, %v1162
        %v1164 = vpop.f32.mrf.mxu0
        %1165 = vdwg.mxu0
        %v1166 = vadd.f32 %v1095, %v1163
        %1167 = vst [vmem:[#allocation4] sm:$0x1] %v1166
        %1168 = vst.msk [vmem:[#allocation2] sm:$0x1] %vm1083, %v1061
        %p1169 = scmp.eq.s32.totalorder %s32, 1
        // Predicated region
        $region73: #{tpu_custom_call.1} parent=55 // pred_check
          %p1170 = pneg %p1169
        $region74: #{tpu_custom_call.1} parent=55 // pred_check_branch
          %1172 = sbr.rel (%p1170) target = $region76
        $region75: #{tpu_custom_call.1} parent=55 // pred_region
          %v1173 = vld [vmem:[#allocation3] sm:$0x1]
          %v1174 = vrcp.pop %v1173
          %v1175 = vld [vmem:[#allocation14] sm:$0x1]
          %v1176 = vld [vmem:[#allocation14 + $0x1] sm:$0x1]
          %v1177 = vld [vmem:[#allocation2] sm:$0x1]
          %1179 = vset.pattern.permute.xlu0 0
          %1180 = vperm.xlu0 %1179, %v1177
          %v1181 = vpop.permute.xlu0 %1180
          %v1183 = vlaneseq
          %v1184 = vshrl.u32 %v1183, 7
          %v1185 = vsub.s32 0, %v1184
          %v1186 = vrot.slane %v1181, %v1185
          %v1187 = vsub.f32 %v1175, %v1186
          %v1188 = vsub.f32 %v1176, %v1186
          %v1189 = vmul.f32 %v1187, 1.442695
          %v1190 = vpow.pop %v1189
          %v1191 = vmul.f32 %v1188, 1.442695
          %v1192 = vpow.pop %v1191
          %1194 = vset.pattern.permute.xlu0 0
          %1195 = vperm.xlu0 %1194, %v1174
          %v1196 = vpop.permute.xlu0 %1195
          %v1198 = vlaneseq
          %v1199 = vshrl.u32 %v1198, 7
          %v1200 = vsub.s32 0, %v1199
          %v1201 = vrot.slane %v1196, %v1200
          %v1202 = vmul.f32 %v1190, %v1201
          %v1203 = vmul.f32 %v1192, %v1201
          %1204 = vst [vmem:[#allocation14] sm:$0x1] %v1202
          %1205 = vst [vmem:[#allocation14 + $0x1] sm:$0x1] %v1203
          %v1206 = vld [vmem:[#allocation4] sm:$0x1]
          %v1207 = vmul.f32 %v1206, %v1201
          %v1208 = vld [vmem:[%s7] sm:$0x1]
          %v1209 = vmul.f32 %v1207, %v1208
          %v1210 = vsel %vm1057, %v1209, 0.0
          %1211 = vadd.xlane.f32.xlu0 %v1210
          %v1212 = vpop.xlane.xlu0 %1211
          %v1213 = vld [vmem:[#allocation6] sm:$0x1]
          %v1214 = vadd.f32 %v1212, %v1213
          %v1215 = vxor.u32 %v1214, 2147483648
          %v1216 = vmul.f32 %v1215, 1.442695
          %v1217 = vpow.pop %v1216
          %v1218 = vadd.f32 %v1217, 1.0
          %v1219 = vrcp.pop %v1218
          %v1220 = vmul.f32 1.0, %v1219
          %1221 = vst.msk [vmem:[#allocation13] sm:$0x1] %vm1083, %v1220
        $region76: #{tpu_custom_call.1} parent=55 // pred_fallthru
          _
        // Predicated region
        $region77: #{tpu_custom_call.1} parent=55 // pred_check
          %p1222 = pneg %p239
        $region78: #{tpu_custom_call.1} parent=55 // pred_check_branch
          %1224 = sbr.rel (%p1222) target = $region80
        $region79: #{tpu_custom_call.1} parent=55 // pred_region
          %s1226 = ssub.s32 16, 16
          %1227 = vsyncadd [#allocation9], %s1226
          %s1229 = sshll.u32 [#allocation13], 4
          %s1230 = int_to_ptr.vmem [resolvable:$true] %s1229
          %1232 = dma.vmem_to_hbm [thread:$0]  %s1230, 16, %s9, [#allocation9]
        $region80: #{tpu_custom_call.1} parent=55 // pred_fallthru
          _
        // Predicated region
        $region81: #{tpu_custom_call.1} parent=55 // pred_check
          %p1233 = pneg %p260
        $region82: #{tpu_custom_call.1} parent=55 // pred_check_branch
          %1235 = sbr.rel (%p1233) target = $region84
        $region83: #{tpu_custom_call.1} parent=55 // pred_region
          %s1237 = ssub.s32 32, 32
          %1238 = vsyncadd [#allocation15], %s1237
          %s1239 = sshll.u32 [#allocation14], 4
          %s1240 = int_to_ptr.vmem [resolvable:$true] %s1239
          %1245 = dma.vmem_to_hbm [thread:$0]  %s1240, 32, %s10, [#allocation15], 16, 16, 1
        $region84: #{tpu_custom_call.1} parent=55 // pred_fallthru
          _
        // Predicated region
        $region85: #{tpu_custom_call.1} parent=55 // pred_check
          %p1246 = pneg %p239
        $region86: #{tpu_custom_call.1} parent=55 // pred_check_branch
          %1248 = sbr.rel (%p1246) target = $region88
        $region87: #{tpu_custom_call.1} parent=55 // pred_region
          %1249 = dma.done [#allocation9], 16
        $region88: #{tpu_custom_call.1} parent=55 // pred_fallthru
          _
        // Predicated region
        $region89: #{tpu_custom_call.1} parent=55 // pred_check
          %p1250 = pneg %p260
        $region90: #{tpu_custom_call.1} parent=55 // pred_check_branch
          %1252 = sbr.rel (%p1250) target = $region92
        $region91: #{tpu_custom_call.1} parent=55 // pred_region
          %1253 = dma.done [#allocation15], 32
        $region92: #{tpu_custom_call.1} parent=55 // pred_fallthru
          _
      $region56: #{tpu_custom_call.1} parent=5 // pred_fallthru
        _
      %p1254 = scmp.le.s32.totalorder 2, %s27
      // Predicated region
      $region93: #{tpu_custom_call.1} parent=5 // pred_check
        %p1255 = pneg %p1254
      $region94: #{tpu_custom_call.1} parent=5 // pred_check_branch
        %1257 = sbr.rel (%p1255) target = $region96
      $region95: #{tpu_custom_call.1} parent=5 // pred_region
        %s1258 = ssub.s32 %s27, 2
      $region96: #{tpu_custom_call.1} parent=5 // pred_fallthru
        _
    $region6: #{tpu_custom_call.1} parent=1 // loop_footer
      %s31 = sadd.s32 1, %s27
    $region7: #{tpu_custom_call.1} parent=1 // loop_footer_branch
      %26 = sbr.rel target = $region3
    $region8: #{tpu_custom_call.1} parent=1 // loop_exit
      _
    %1259 = vsyncpa [#allocation8], 1
    %s1260 = scalar_lea.sflag [#allocation8], 1
    %1261 = vsyncpa %s1260, 1
    %1262 = vsyncpa [#allocation11], 1
    %1263 = vsyncpa [#allocation9], 1
    %s1264 = scalar_lea.sflag [#allocation9], 1
    %1265 = vsyncpa %s1264, 1
    %1266 = vsyncpa [#allocation15], 1

</llo_original>
